<compile_context>
chip_gen: v5e
topology: v5e:2x2
jax: 0.10.0
libtpu: 0.0.40
codegen_flags: <defaults>
</compile_context>

<pallas_src>
import functools

import jax
import jax.numpy as jnp
from jax.experimental import pallas as pl
from jax.experimental.pallas import tpu as pltpu

input_dim = 21
hidden_dim = 64
layer_dim = 1       # single GRU layer
output_dim = 1

HP = 128            # padded hidden / lane width (one full vreg lane dim)
GP = 3 * HP         # packed gate width (r | z | n), each in its own 128-lane block


def gru_kernel(x_ref, w_ref, b_ref, h_out_ref, gi_ref):
    """x_ref: (T*B, 128) padded time-major inputs (MXU dtype)
       w_ref: (3, 128, 384) packed [W_ih | W_hh | W_fc] (MXU dtype)
       b_ref: (3, 384) f32 packed biases
       h_out_ref: (B, 128) f32 output (col 0 = fc result)
       gi_ref: (T*B, 384) f32 VMEM scratch for the input projections."""
    TB, _ = x_ref.shape
    B = h_out_ref.shape[0]
    T = TB // B
    mxu_dtype = w_ref.dtype

    # Non-recurrent input projection for ALL timesteps in one MXU call (off the
    # serial chain); biases for r/z (b_ih + b_hh) and n (b_ih only) are folded
    # in.  Result parked in VMEM scratch, read back one (B, 384) slab per step.
    gi = jnp.dot(x_ref[...], w_ref[0], preferred_element_type=jnp.float32)
    gi = gi + b_ref[0:1, :]
    gi_ref[...] = gi

    # Hidden bias of the n-gate stays separate (it is scaled by r).
    b_hn = jnp.broadcast_to(b_ref[1:2, 2 * HP:3 * HP], (B, HP))       # (B, 128)

    # ---- Peel t == 0: h0 == 0, so the hidden matmul vanishes and gh_n == b_hn.
    g0 = gi[0:B]                                                      # (B, 384)
    r0 = jax.nn.sigmoid(g0[:, 0:HP])
    z0 = jax.nn.sigmoid(g0[:, HP:2 * HP])
    n0 = jnp.tanh(g0[:, 2 * HP:3 * HP] + r0 * b_hn)
    h1 = n0 - z0 * n0                       # == (1 - z0) * n0 since h0 == 0

    def step(t, h):
        row = pl.multiple_of(t * B, B)
        g = gi_ref[pl.ds(row, B), :]                                  # (B, 384)
        # ONE fused hidden matmul per step for all three gates.
        gh = jnp.dot(h.astype(mxu_dtype), w_ref[1],
                     preferred_element_type=jnp.float32)              # (B, 384)
        # r first: it gates the tanh and sits on the EUP critical chain.
        r = jax.nn.sigmoid(g[:, 0:HP] + gh[:, 0:HP])
        z = jax.nn.sigmoid(g[:, HP:2 * HP] + gh[:, HP:2 * HP])
        n = jnp.tanh(g[:, 2 * HP:3 * HP] + r * (gh[:, 2 * HP:3 * HP] + b_hn))
        return n + z * (h - n)              # == (1 - z) * n + z * h

    h_last = jax.lax.fori_loop(1, T, step, h1, unroll=True)

    # Linear head (H -> 1) fused in-kernel, off the serial chain; lane-dense
    # (B, 128) store (real result lives in column 0).
    y = jnp.dot(h_last.astype(mxu_dtype), w_ref[2, :, 0:HP],
                preferred_element_type=jnp.float32)
    h_out_ref[...] = (y + b_ref[2:3, 0:HP]).astype(h_out_ref.dtype)


def _pack_weights(params, mxu_dtype):
    """Pack all weights into (3, 128, 384) and all biases into (3, 384)."""
    H, D = hidden_dim, input_dim
    assert H <= HP and D <= HP
    w_ih, w_hh = params["w_ih"], params["w_hh"]        # (3H, D), (3H, H)
    b_ih, b_hh = params["b_ih"], params["b_hh"]        # (3H,), (3H,)
    fc_w, fc_b = params["fc_w"], params["fc_b"]        # (1, H), (1,)

    w_ih_p = jnp.zeros((HP, GP), jnp.float32)
    w_hh_p = jnp.zeros((HP, GP), jnp.float32)
    fc_p = jnp.zeros((HP, GP), jnp.float32)
    b_all = jnp.zeros((3, GP), jnp.float32)
    for g in range(3):                                  # gate order [r, z, n]
        w_ih_p = w_ih_p.at[:D, g * HP:g * HP + H].set(w_ih[g * H:(g + 1) * H, :].T)
        w_hh_p = w_hh_p.at[:H, g * HP:g * HP + H].set(w_hh[g * H:(g + 1) * H, :].T)
        gi_bias = b_ih[g * H:(g + 1) * H]
        if g < 2:                                       # fold b_hh for r/z only
            gi_bias = gi_bias + b_hh[g * H:(g + 1) * H]
        b_all = b_all.at[0, g * HP:g * HP + H].set(gi_bias)
    b_all = b_all.at[1, 2 * HP:2 * HP + H].set(b_hh[2 * H:3 * H])   # b_hh_n
    b_all = b_all.at[2, 0:HP].set(fc_b[0])                          # fc bias
    fc_p = fc_p.at[:H, 0:output_dim].set(fc_w.T)

    w_all = jnp.stack([w_ih_p, w_hh_p, fc_p]).astype(mxu_dtype)     # (3,128,384)
    return w_all, b_all


def gru_model_forward(x, params, *, mxu_dtype=jnp.float32):
    """x: (B, T, D_in) float32  ->  (B, output_dim) float32"""
    B, T, D = x.shape
    w_all, b_all = _pack_weights(params, mxu_dtype)

    # Time-major, flattened over (T, B), zero-padded 21 -> 128 lanes.
    x_tm = jnp.transpose(x, (1, 0, 2)).reshape(T * B, D)
    x_p = jnp.zeros((T * B, HP), mxu_dtype).at[:, :D].set(x_tm.astype(mxu_dtype))

    h_out = pl.pallas_call(
        gru_kernel,
        out_shape=jax.ShapeDtypeStruct((B, HP), jnp.float32),
        grid_spec=pltpu.PrefetchScalarGridSpec(
            num_scalar_prefetch=0,
            grid=(1,),                                  # recurrence runs in-kernel
            in_specs=[
                pl.BlockSpec((T * B, HP), lambda i: (0, 0)),      # packed x
                pl.BlockSpec((3, HP, GP), lambda i: (0, 0, 0)),   # packed weights
                pl.BlockSpec((3, GP), lambda i: (0, 0)),          # packed biases
            ],
            out_specs=pl.BlockSpec((B, HP), lambda i: (0, 0)),
            scratch_shapes=[pltpu.VMEM((T * B, GP), jnp.float32)],
        ),
        compiler_params=pltpu.CompilerParams(
            dimension_semantics=("arbitrary",),
        ),
    )(x_p, w_all, b_all)

    return h_out[:, :output_dim]


def init_params(key):
    """Deterministic init mimicking PyTorch's uniform(-1/sqrt(H), 1/sqrt(H))."""
    ks = jax.random.split(key, 6)
    bound = 1.0 / jnp.sqrt(jnp.float32(hidden_dim))
    u = lambda k, shape, b: jax.random.uniform(k, shape, jnp.float32, -b, b)
    return {
        "w_ih": u(ks[0], (3 * hidden_dim, input_dim), bound),
        "w_hh": u(ks[1], (3 * hidden_dim, hidden_dim), bound),
        "b_ih": u(ks[2], (3 * hidden_dim,), bound),
        "b_hh": u(ks[3], (3 * hidden_dim,), bound),
        "fc_w": u(ks[4], (output_dim, hidden_dim), bound),
        "fc_b": u(ks[5], (output_dim,), bound),
    }


def gru_model_reference(x, params):
    """Pure-JAX reference of the PyTorch forward (lax.scan over time)."""
    B = x.shape[0]
    H = hidden_dim
    w_ih, w_hh = params["w_ih"], params["w_hh"]
    b_ih, b_hh = params["b_ih"], params["b_hh"]

    def step(h, x_t):
        gi = x_t @ w_ih.T + b_ih
        gh = h @ w_hh.T + b_hh
        i_r, i_z, i_n = gi[:, :H], gi[:, H:2 * H], gi[:, 2 * H:]
        h_r, h_z, h_n = gh[:, :H], gh[:, H:2 * H], gh[:, 2 * H:]
        r = jax.nn.sigmoid(i_r + h_r)
        z = jax.nn.sigmoid(i_z + h_z)
        n = jnp.tanh(i_n + r * h_n)
        h_new = (1.0 - z) * n + z * h
        return h_new, None

    h0 = jnp.zeros((B, H), jnp.float32)
    h_last, _ = jax.lax.scan(step, h0, jnp.transpose(x, (1, 0, 2)))
    return h_last @ params["fc_w"].T + params["fc_b"]


if __name__ == "__main__":
    key = jax.random.PRNGKey(0)
    k_params, k_x = jax.random.split(key)

    B, T = 8, 8
    x = jax.random.normal(k_x, (B, T, input_dim), jnp.float32)
    params = init_params(k_params)

    ref = gru_model_reference(x, params)

    # Default path: f32 MXU operands, matches the f32 PyTorch math tightly.
    fwd = jax.jit(gru_model_forward)
    out = jax.block_until_ready(fwd(x, params))
    assert out.shape == (B, output_dim)
    assert jnp.allclose(out, ref, atol=1e-4, rtol=1e-4), (out, ref)

    # bf16 MXU-operand path (v6e/v7x perf suggestion): gate math stays f32,
    # only matmul operands are bf16 — validated at a looser tolerance.
    fwd_bf16 = jax.jit(functools.partial(gru_model_forward,
                                         mxu_dtype=jnp.bfloat16))
    out_bf16 = jax.block_until_ready(fwd_bf16(x, params))
    assert jnp.allclose(out_bf16, ref, atol=1e-1, rtol=1e-1), (out_bf16, ref)

    print("KERNEL_OK")
</pallas_src>

<mosaic_0001>
module attributes {stable_mosaic.version = 11 : i64} {
  func.func @gru_kernel(%arg0: i32, %arg1: memref<64x128xf32, #tpu.memory_space<vmem>>, %arg2: memref<3x128x384xf32, #tpu.memory_space<vmem>>, %arg3: memref<3x384xf32, #tpu.memory_space<vmem>>, %arg4: memref<8x128xf32, #tpu.memory_space<vmem>>, %arg5: memref<64x384xf32, #tpu.memory_space<vmem>>) attributes {dimension_semantics = [#tpu.dimension_semantics<arbitrary>], iteration_bounds = array<i64: 1>, scalar_prefetch = 0 : i64, scratch_operands = 1 : i64, tpu.core_type = #tpu.core_type<tc>, window_params = [{pipeline_mode = #tpu.pipeline_mode<synchronous>, transform_indices = @transform_0, window_bounds = array<i64: 64, 128>}, {pipeline_mode = #tpu.pipeline_mode<synchronous>, transform_indices = @transform_1, window_bounds = array<i64: 3, 128, 384>}, {pipeline_mode = #tpu.pipeline_mode<synchronous>, transform_indices = @transform_2, window_bounds = array<i64: 3, 384>}, {pipeline_mode = #tpu.pipeline_mode<synchronous>, transform_indices = @transform_3, window_bounds = array<i64: 8, 128>}]} {
    %c0 = arith.constant 0 : index
    %c0_0 = arith.constant 0 : index
    %0 = vector.load %arg1[%c0, %c0_0] : memref<64x128xf32, #tpu.memory_space<vmem>>, vector<64x128xf32>
    %c0_1 = arith.constant 0 : index
    %c0_2 = arith.constant 0 : index
    %c0_3 = arith.constant 0 : index
    %1 = vector.load %arg2[%c0_1, %c0_2, %c0_3] : memref<3x128x384xf32, #tpu.memory_space<vmem>>, vector<1x128x384xf32>
    %2 = vector.shape_cast %1 : vector<1x128x384xf32> to vector<128x384xf32>
    %cst = arith.constant dense<0.000000e+00> : vector<64x384xf32>
    %3 = tpu.matmul %0, %2, %cst {dimension_numbers = #tpu.dot_dimension_numbers<[1], [0], [0], [1], [0, 0, 1, 1], [], []>} : vector<64x128xf32>, vector<128x384xf32>, vector<64x384xf32> -> vector<64x384xf32>
    %c0_4 = arith.constant 0 : index
    %c0_5 = arith.constant 0 : index
    %4 = vector.load %arg3[%c0_4, %c0_5] : memref<3x384xf32, #tpu.memory_space<vmem>>, vector<1x384xf32>
    %5 = vector.broadcast %4 : vector<1x384xf32> to vector<64x384xf32>
    %6 = arith.addf %3, %5 : vector<64x384xf32>
    %c0_6 = arith.constant 0 : index
    %c0_7 = arith.constant 0 : index
    %7 = vector.load %arg5[%c0_6, %c0_7] : memref<64x384xf32, #tpu.memory_space<vmem>>, vector<64x384xf32>
    tpu.vector_store %arg5[%c0_6, %c0_7], %6 {strides = array<i32>} : memref<64x384xf32, #tpu.memory_space<vmem>>, vector<64x384xf32>,
    %c1 = arith.constant 1 : index
    %c256 = arith.constant 256 : index
    %8 = vector.load %arg3[%c1, %c256] : memref<3x384xf32, #tpu.memory_space<vmem>>, vector<1x128xf32>
    %9 = vector.shape_cast %8 : vector<1x128xf32> to vector<1x128xf32>
    %10 = vector.broadcast %9 : vector<1x128xf32> to vector<8x128xf32>
    %11 = vector.extract_strided_slice %6 {offsets = [0, 0], sizes = [8, 384], strides = [1, 1]} : vector<64x384xf32> to vector<8x384xf32>
    %12 = vector.extract_strided_slice %11 {offsets = [0, 0], sizes = [8, 128], strides = [1, 1]} : vector<8x384xf32> to vector<8x128xf32>
    %13 = arith.negf %12 : vector<8x128xf32>
    %14 = math.exp %13 : vector<8x128xf32>
    %cst_8 = arith.constant 1.000000e+00 : f32
    %15 = vector.broadcast %cst_8 : f32 to vector<8x128xf32>
    %16 = arith.addf %15, %14 : vector<8x128xf32>
    %17 = arith.divf %15, %16 : vector<8x128xf32>
    %18 = vector.extract_strided_slice %11 {offsets = [0, 128], sizes = [8, 128], strides = [1, 1]} : vector<8x384xf32> to vector<8x128xf32>
    %19 = arith.negf %18 : vector<8x128xf32>
    %20 = math.exp %19 : vector<8x128xf32>
    %cst_9 = arith.constant 1.000000e+00 : f32
    %21 = vector.broadcast %cst_9 : f32 to vector<8x128xf32>
    %22 = arith.addf %21, %20 : vector<8x128xf32>
    %23 = arith.divf %21, %22 : vector<8x128xf32>
    %24 = vector.extract_strided_slice %11 {offsets = [0, 256], sizes = [8, 128], strides = [1, 1]} : vector<8x384xf32> to vector<8x128xf32>
    %25 = arith.mulf %17, %10 : vector<8x128xf32>
    %26 = arith.addf %24, %25 : vector<8x128xf32>
    %27 = math.tanh %26 : vector<8x128xf32>
    %28 = arith.mulf %23, %27 : vector<8x128xf32>
    %29 = arith.subf %27, %28 : vector<8x128xf32>
    %c1_i32 = arith.constant 1 : i32
    %c8_i32 = arith.constant 8 : i32
    %30 = arith.muli %c1_i32, %c8_i32 : i32
    %31 = tpu.assume_multiple %30, 8 : i32
    %32 = arith.index_cast %31 : i32 to index
    %c0_10 = arith.constant 0 : index
    %33 = vector.load %arg5[%32, %c0_10] : memref<64x384xf32, #tpu.memory_space<vmem>>, vector<8x384xf32>
    %c1_11 = arith.constant 1 : index
    %c0_12 = arith.constant 0 : index
    %c0_13 = arith.constant 0 : index
    %34 = vector.load %arg2[%c1_11, %c0_12, %c0_13] : memref<3x128x384xf32, #tpu.memory_space<vmem>>, vector<1x128x384xf32>
    %35 = vector.shape_cast %34 : vector<1x128x384xf32> to vector<128x384xf32>
    %cst_14 = arith.constant dense<0.000000e+00> : vector<8x384xf32>
    %36 = tpu.matmul %29, %35, %cst_14 {dimension_numbers = #tpu.dot_dimension_numbers<[1], [0], [0], [1], [0, 0, 1, 1], [], []>} : vector<8x128xf32>, vector<128x384xf32>, vector<8x384xf32> -> vector<8x384xf32>
    %37 = vector.extract_strided_slice %33 {offsets = [0, 0], sizes = [8, 128], strides = [1, 1]} : vector<8x384xf32> to vector<8x128xf32>
    %38 = vector.extract_strided_slice %36 {offsets = [0, 0], sizes = [8, 128], strides = [1, 1]} : vector<8x384xf32> to vector<8x128xf32>
    %39 = arith.addf %37, %38 : vector<8x128xf32>
    %40 = arith.negf %39 : vector<8x128xf32>
    %41 = math.exp %40 : vector<8x128xf32>
    %cst_15 = arith.constant 1.000000e+00 : f32
    %42 = vector.broadcast %cst_15 : f32 to vector<8x128xf32>
    %43 = arith.addf %42, %41 : vector<8x128xf32>
    %44 = arith.divf %42, %43 : vector<8x128xf32>
    %45 = vector.extract_strided_slice %33 {offsets = [0, 128], sizes = [8, 128], strides = [1, 1]} : vector<8x384xf32> to vector<8x128xf32>
    %46 = vector.extract_strided_slice %36 {offsets = [0, 128], sizes = [8, 128], strides = [1, 1]} : vector<8x384xf32> to vector<8x128xf32>
    %47 = arith.addf %45, %46 : vector<8x128xf32>
    %48 = arith.negf %47 : vector<8x128xf32>
    %49 = math.exp %48 : vector<8x128xf32>
    %cst_16 = arith.constant 1.000000e+00 : f32
    %50 = vector.broadcast %cst_16 : f32 to vector<8x128xf32>
    %51 = arith.addf %50, %49 : vector<8x128xf32>
    %52 = arith.divf %50, %51 : vector<8x128xf32>
    %53 = vector.extract_strided_slice %33 {offsets = [0, 256], sizes = [8, 128], strides = [1, 1]} : vector<8x384xf32> to vector<8x128xf32>
    %54 = vector.extract_strided_slice %36 {offsets = [0, 256], sizes = [8, 128], strides = [1, 1]} : vector<8x384xf32> to vector<8x128xf32>
    %55 = arith.addf %54, %10 : vector<8x128xf32>
    %56 = arith.mulf %44, %55 : vector<8x128xf32>
    %57 = arith.addf %53, %56 : vector<8x128xf32>
    %58 = math.tanh %57 : vector<8x128xf32>
    %59 = arith.subf %29, %58 : vector<8x128xf32>
    %60 = arith.mulf %52, %59 : vector<8x128xf32>
    %61 = arith.addf %58, %60 : vector<8x128xf32>
    %c2_i32 = arith.constant 2 : i32
    %c8_i32_17 = arith.constant 8 : i32
    %62 = arith.muli %c2_i32, %c8_i32_17 : i32
    %63 = tpu.assume_multiple %62, 8 : i32
    %64 = arith.index_cast %63 : i32 to index
    %c0_18 = arith.constant 0 : index
    %65 = vector.load %arg5[%64, %c0_18] : memref<64x384xf32, #tpu.memory_space<vmem>>, vector<8x384xf32>
    %c1_19 = arith.constant 1 : index
    %c0_20 = arith.constant 0 : index
    %c0_21 = arith.constant 0 : index
    %66 = vector.load %arg2[%c1_19, %c0_20, %c0_21] : memref<3x128x384xf32, #tpu.memory_space<vmem>>, vector<1x128x384xf32>
    %67 = vector.shape_cast %66 : vector<1x128x384xf32> to vector<128x384xf32>
    %cst_22 = arith.constant dense<0.000000e+00> : vector<8x384xf32>
    %68 = tpu.matmul %61, %67, %cst_22 {dimension_numbers = #tpu.dot_dimension_numbers<[1], [0], [0], [1], [0, 0, 1, 1], [], []>} : vector<8x128xf32>, vector<128x384xf32>, vector<8x384xf32> -> vector<8x384xf32>
    %69 = vector.extract_strided_slice %65 {offsets = [0, 0], sizes = [8, 128], strides = [1, 1]} : vector<8x384xf32> to vector<8x128xf32>
    %70 = vector.extract_strided_slice %68 {offsets = [0, 0], sizes = [8, 128], strides = [1, 1]} : vector<8x384xf32> to vector<8x128xf32>
    %71 = arith.addf %69, %70 : vector<8x128xf32>
    %72 = arith.negf %71 : vector<8x128xf32>
    %73 = math.exp %72 : vector<8x128xf32>
    %cst_23 = arith.constant 1.000000e+00 : f32
    %74 = vector.broadcast %cst_23 : f32 to vector<8x128xf32>
    %75 = arith.addf %74, %73 : vector<8x128xf32>
    %76 = arith.divf %74, %75 : vector<8x128xf32>
    %77 = vector.extract_strided_slice %65 {offsets = [0, 128], sizes = [8, 128], strides = [1, 1]} : vector<8x384xf32> to vector<8x128xf32>
    %78 = vector.extract_strided_slice %68 {offsets = [0, 128], sizes = [8, 128], strides = [1, 1]} : vector<8x384xf32> to vector<8x128xf32>
    %79 = arith.addf %77, %78 : vector<8x128xf32>
    %80 = arith.negf %79 : vector<8x128xf32>
    %81 = math.exp %80 : vector<8x128xf32>
    %cst_24 = arith.constant 1.000000e+00 : f32
    %82 = vector.broadcast %cst_24 : f32 to vector<8x128xf32>
    %83 = arith.addf %82, %81 : vector<8x128xf32>
    %84 = arith.divf %82, %83 : vector<8x128xf32>
    %85 = vector.extract_strided_slice %65 {offsets = [0, 256], sizes = [8, 128], strides = [1, 1]} : vector<8x384xf32> to vector<8x128xf32>
    %86 = vector.extract_strided_slice %68 {offsets = [0, 256], sizes = [8, 128], strides = [1, 1]} : vector<8x384xf32> to vector<8x128xf32>
    %87 = arith.addf %86, %10 : vector<8x128xf32>
    %88 = arith.mulf %76, %87 : vector<8x128xf32>
    %89 = arith.addf %85, %88 : vector<8x128xf32>
    %90 = math.tanh %89 : vector<8x128xf32>
    %91 = arith.subf %61, %90 : vector<8x128xf32>
    %92 = arith.mulf %84, %91 : vector<8x128xf32>
    %93 = arith.addf %90, %92 : vector<8x128xf32>
    %c3_i32 = arith.constant 3 : i32
    %c8_i32_25 = arith.constant 8 : i32
    %94 = arith.muli %c3_i32, %c8_i32_25 : i32
    %95 = tpu.assume_multiple %94, 8 : i32
    %96 = arith.index_cast %95 : i32 to index
    %c0_26 = arith.constant 0 : index
    %97 = vector.load %arg5[%96, %c0_26] : memref<64x384xf32, #tpu.memory_space<vmem>>, vector<8x384xf32>
    %c1_27 = arith.constant 1 : index
    %c0_28 = arith.constant 0 : index
    %c0_29 = arith.constant 0 : index
    %98 = vector.load %arg2[%c1_27, %c0_28, %c0_29] : memref<3x128x384xf32, #tpu.memory_space<vmem>>, vector<1x128x384xf32>
    %99 = vector.shape_cast %98 : vector<1x128x384xf32> to vector<128x384xf32>
    %cst_30 = arith.constant dense<0.000000e+00> : vector<8x384xf32>
    %100 = tpu.matmul %93, %99, %cst_30 {dimension_numbers = #tpu.dot_dimension_numbers<[1], [0], [0], [1], [0, 0, 1, 1], [], []>} : vector<8x128xf32>, vector<128x384xf32>, vector<8x384xf32> -> vector<8x384xf32>
    %101 = vector.extract_strided_slice %97 {offsets = [0, 0], sizes = [8, 128], strides = [1, 1]} : vector<8x384xf32> to vector<8x128xf32>
    %102 = vector.extract_strided_slice %100 {offsets = [0, 0], sizes = [8, 128], strides = [1, 1]} : vector<8x384xf32> to vector<8x128xf32>
    %103 = arith.addf %101, %102 : vector<8x128xf32>
    %104 = arith.negf %103 : vector<8x128xf32>
    %105 = math.exp %104 : vector<8x128xf32>
    %cst_31 = arith.constant 1.000000e+00 : f32
    %106 = vector.broadcast %cst_31 : f32 to vector<8x128xf32>
    %107 = arith.addf %106, %105 : vector<8x128xf32>
    %108 = arith.divf %106, %107 : vector<8x128xf32>
    %109 = vector.extract_strided_slice %97 {offsets = [0, 128], sizes = [8, 128], strides = [1, 1]} : vector<8x384xf32> to vector<8x128xf32>
    %110 = vector.extract_strided_slice %100 {offsets = [0, 128], sizes = [8, 128], strides = [1, 1]} : vector<8x384xf32> to vector<8x128xf32>
    %111 = arith.addf %109, %110 : vector<8x128xf32>
    %112 = arith.negf %111 : vector<8x128xf32>
    %113 = math.exp %112 : vector<8x128xf32>
    %cst_32 = arith.constant 1.000000e+00 : f32
    %114 = vector.broadcast %cst_32 : f32 to vector<8x128xf32>
    %115 = arith.addf %114, %113 : vector<8x128xf32>
    %116 = arith.divf %114, %115 : vector<8x128xf32>
    %117 = vector.extract_strided_slice %97 {offsets = [0, 256], sizes = [8, 128], strides = [1, 1]} : vector<8x384xf32> to vector<8x128xf32>
    %118 = vector.extract_strided_slice %100 {offsets = [0, 256], sizes = [8, 128], strides = [1, 1]} : vector<8x384xf32> to vector<8x128xf32>
    %119 = arith.addf %118, %10 : vector<8x128xf32>
    %120 = arith.mulf %108, %119 : vector<8x128xf32>
    %121 = arith.addf %117, %120 : vector<8x128xf32>
    %122 = math.tanh %121 : vector<8x128xf32>
    %123 = arith.subf %93, %122 : vector<8x128xf32>
    %124 = arith.mulf %116, %123 : vector<8x128xf32>
    %125 = arith.addf %122, %124 : vector<8x128xf32>
    %c4_i32 = arith.constant 4 : i32
    %c8_i32_33 = arith.constant 8 : i32
    %126 = arith.muli %c4_i32, %c8_i32_33 : i32
    %127 = tpu.assume_multiple %126, 8 : i32
    %128 = arith.index_cast %127 : i32 to index
    %c0_34 = arith.constant 0 : index
    %129 = vector.load %arg5[%128, %c0_34] : memref<64x384xf32, #tpu.memory_space<vmem>>, vector<8x384xf32>
    %c1_35 = arith.constant 1 : index
    %c0_36 = arith.constant 0 : index
    %c0_37 = arith.constant 0 : index
    %130 = vector.load %arg2[%c1_35, %c0_36, %c0_37] : memref<3x128x384xf32, #tpu.memory_space<vmem>>, vector<1x128x384xf32>
    %131 = vector.shape_cast %130 : vector<1x128x384xf32> to vector<128x384xf32>
    %cst_38 = arith.constant dense<0.000000e+00> : vector<8x384xf32>
    %132 = tpu.matmul %125, %131, %cst_38 {dimension_numbers = #tpu.dot_dimension_numbers<[1], [0], [0], [1], [0, 0, 1, 1], [], []>} : vector<8x128xf32>, vector<128x384xf32>, vector<8x384xf32> -> vector<8x384xf32>
    %133 = vector.extract_strided_slice %129 {offsets = [0, 0], sizes = [8, 128], strides = [1, 1]} : vector<8x384xf32> to vector<8x128xf32>
    %134 = vector.extract_strided_slice %132 {offsets = [0, 0], sizes = [8, 128], strides = [1, 1]} : vector<8x384xf32> to vector<8x128xf32>
    %135 = arith.addf %133, %134 : vector<8x128xf32>
    %136 = arith.negf %135 : vector<8x128xf32>
    %137 = math.exp %136 : vector<8x128xf32>
    %cst_39 = arith.constant 1.000000e+00 : f32
    %138 = vector.broadcast %cst_39 : f32 to vector<8x128xf32>
    %139 = arith.addf %138, %137 : vector<8x128xf32>
    %140 = arith.divf %138, %139 : vector<8x128xf32>
    %141 = vector.extract_strided_slice %129 {offsets = [0, 128], sizes = [8, 128], strides = [1, 1]} : vector<8x384xf32> to vector<8x128xf32>
    %142 = vector.extract_strided_slice %132 {offsets = [0, 128], sizes = [8, 128], strides = [1, 1]} : vector<8x384xf32> to vector<8x128xf32>
    %143 = arith.addf %141, %142 : vector<8x128xf32>
    %144 = arith.negf %143 : vector<8x128xf32>
    %145 = math.exp %144 : vector<8x128xf32>
    %cst_40 = arith.constant 1.000000e+00 : f32
    %146 = vector.broadcast %cst_40 : f32 to vector<8x128xf32>
    %147 = arith.addf %146, %145 : vector<8x128xf32>
    %148 = arith.divf %146, %147 : vector<8x128xf32>
    %149 = vector.extract_strided_slice %129 {offsets = [0, 256], sizes = [8, 128], strides = [1, 1]} : vector<8x384xf32> to vector<8x128xf32>
    %150 = vector.extract_strided_slice %132 {offsets = [0, 256], sizes = [8, 128], strides = [1, 1]} : vector<8x384xf32> to vector<8x128xf32>
    %151 = arith.addf %150, %10 : vector<8x128xf32>
    %152 = arith.mulf %140, %151 : vector<8x128xf32>
    %153 = arith.addf %149, %152 : vector<8x128xf32>
    %154 = math.tanh %153 : vector<8x128xf32>
    %155 = arith.subf %125, %154 : vector<8x128xf32>
    %156 = arith.mulf %148, %155 : vector<8x128xf32>
    %157 = arith.addf %154, %156 : vector<8x128xf32>
    %c5_i32 = arith.constant 5 : i32
    %c8_i32_41 = arith.constant 8 : i32
    %158 = arith.muli %c5_i32, %c8_i32_41 : i32
    %159 = tpu.assume_multiple %158, 8 : i32
    %160 = arith.index_cast %159 : i32 to index
    %c0_42 = arith.constant 0 : index
    %161 = vector.load %arg5[%160, %c0_42] : memref<64x384xf32, #tpu.memory_space<vmem>>, vector<8x384xf32>
    %c1_43 = arith.constant 1 : index
    %c0_44 = arith.constant 0 : index
    %c0_45 = arith.constant 0 : index
    %162 = vector.load %arg2[%c1_43, %c0_44, %c0_45] : memref<3x128x384xf32, #tpu.memory_space<vmem>>, vector<1x128x384xf32>
    %163 = vector.shape_cast %162 : vector<1x128x384xf32> to vector<128x384xf32>
    %cst_46 = arith.constant dense<0.000000e+00> : vector<8x384xf32>
    %164 = tpu.matmul %157, %163, %cst_46 {dimension_numbers = #tpu.dot_dimension_numbers<[1], [0], [0], [1], [0, 0, 1, 1], [], []>} : vector<8x128xf32>, vector<128x384xf32>, vector<8x384xf32> -> vector<8x384xf32>
    %165 = vector.extract_strided_slice %161 {offsets = [0, 0], sizes = [8, 128], strides = [1, 1]} : vector<8x384xf32> to vector<8x128xf32>
    %166 = vector.extract_strided_slice %164 {offsets = [0, 0], sizes = [8, 128], strides = [1, 1]} : vector<8x384xf32> to vector<8x128xf32>
    %167 = arith.addf %165, %166 : vector<8x128xf32>
    %168 = arith.negf %167 : vector<8x128xf32>
    %169 = math.exp %168 : vector<8x128xf32>
    %cst_47 = arith.constant 1.000000e+00 : f32
    %170 = vector.broadcast %cst_47 : f32 to vector<8x128xf32>
    %171 = arith.addf %170, %169 : vector<8x128xf32>
    %172 = arith.divf %170, %171 : vector<8x128xf32>
    %173 = vector.extract_strided_slice %161 {offsets = [0, 128], sizes = [8, 128], strides = [1, 1]} : vector<8x384xf32> to vector<8x128xf32>
    %174 = vector.extract_strided_slice %164 {offsets = [0, 128], sizes = [8, 128], strides = [1, 1]} : vector<8x384xf32> to vector<8x128xf32>
    %175 = arith.addf %173, %174 : vector<8x128xf32>
    %176 = arith.negf %175 : vector<8x128xf32>
    %177 = math.exp %176 : vector<8x128xf32>
    %cst_48 = arith.constant 1.000000e+00 : f32
    %178 = vector.broadcast %cst_48 : f32 to vector<8x128xf32>
    %179 = arith.addf %178, %177 : vector<8x128xf32>
    %180 = arith.divf %178, %179 : vector<8x128xf32>
    %181 = vector.extract_strided_slice %161 {offsets = [0, 256], sizes = [8, 128], strides = [1, 1]} : vector<8x384xf32> to vector<8x128xf32>
    %182 = vector.extract_strided_slice %164 {offsets = [0, 256], sizes = [8, 128], strides = [1, 1]} : vector<8x384xf32> to vector<8x128xf32>
    %183 = arith.addf %182, %10 : vector<8x128xf32>
    %184 = arith.mulf %172, %183 : vector<8x128xf32>
    %185 = arith.addf %181, %184 : vector<8x128xf32>
    %186 = math.tanh %185 : vector<8x128xf32>
    %187 = arith.subf %157, %186 : vector<8x128xf32>
    %188 = arith.mulf %180, %187 : vector<8x128xf32>
    %189 = arith.addf %186, %188 : vector<8x128xf32>
    %c6_i32 = arith.constant 6 : i32
    %c8_i32_49 = arith.constant 8 : i32
    %190 = arith.muli %c6_i32, %c8_i32_49 : i32
    %191 = tpu.assume_multiple %190, 8 : i32
    %192 = arith.index_cast %191 : i32 to index
    %c0_50 = arith.constant 0 : index
    %193 = vector.load %arg5[%192, %c0_50] : memref<64x384xf32, #tpu.memory_space<vmem>>, vector<8x384xf32>
    %c1_51 = arith.constant 1 : index
    %c0_52 = arith.constant 0 : index
    %c0_53 = arith.constant 0 : index
    %194 = vector.load %arg2[%c1_51, %c0_52, %c0_53] : memref<3x128x384xf32, #tpu.memory_space<vmem>>, vector<1x128x384xf32>
    %195 = vector.shape_cast %194 : vector<1x128x384xf32> to vector<128x384xf32>
    %cst_54 = arith.constant dense<0.000000e+00> : vector<8x384xf32>
    %196 = tpu.matmul %189, %195, %cst_54 {dimension_numbers = #tpu.dot_dimension_numbers<[1], [0], [0], [1], [0, 0, 1, 1], [], []>} : vector<8x128xf32>, vector<128x384xf32>, vector<8x384xf32> -> vector<8x384xf32>
    %197 = vector.extract_strided_slice %193 {offsets = [0, 0], sizes = [8, 128], strides = [1, 1]} : vector<8x384xf32> to vector<8x128xf32>
    %198 = vector.extract_strided_slice %196 {offsets = [0, 0], sizes = [8, 128], strides = [1, 1]} : vector<8x384xf32> to vector<8x128xf32>
    %199 = arith.addf %197, %198 : vector<8x128xf32>
    %200 = arith.negf %199 : vector<8x128xf32>
    %201 = math.exp %200 : vector<8x128xf32>
    %cst_55 = arith.constant 1.000000e+00 : f32
    %202 = vector.broadcast %cst_55 : f32 to vector<8x128xf32>
    %203 = arith.addf %202, %201 : vector<8x128xf32>
    %204 = arith.divf %202, %203 : vector<8x128xf32>
    %205 = vector.extract_strided_slice %193 {offsets = [0, 128], sizes = [8, 128], strides = [1, 1]} : vector<8x384xf32> to vector<8x128xf32>
    %206 = vector.extract_strided_slice %196 {offsets = [0, 128], sizes = [8, 128], strides = [1, 1]} : vector<8x384xf32> to vector<8x128xf32>
    %207 = arith.addf %205, %206 : vector<8x128xf32>
    %208 = arith.negf %207 : vector<8x128xf32>
    %209 = math.exp %208 : vector<8x128xf32>
    %cst_56 = arith.constant 1.000000e+00 : f32
    %210 = vector.broadcast %cst_56 : f32 to vector<8x128xf32>
    %211 = arith.addf %210, %209 : vector<8x128xf32>
    %212 = arith.divf %210, %211 : vector<8x128xf32>
    %213 = vector.extract_strided_slice %193 {offsets = [0, 256], sizes = [8, 128], strides = [1, 1]} : vector<8x384xf32> to vector<8x128xf32>
    %214 = vector.extract_strided_slice %196 {offsets = [0, 256], sizes = [8, 128], strides = [1, 1]} : vector<8x384xf32> to vector<8x128xf32>
    %215 = arith.addf %214, %10 : vector<8x128xf32>
    %216 = arith.mulf %204, %215 : vector<8x128xf32>
    %217 = arith.addf %213, %216 : vector<8x128xf32>
    %218 = math.tanh %217 : vector<8x128xf32>
    %219 = arith.subf %189, %218 : vector<8x128xf32>
    %220 = arith.mulf %212, %219 : vector<8x128xf32>
    %221 = arith.addf %218, %220 : vector<8x128xf32>
    %c7_i32 = arith.constant 7 : i32
    %c8_i32_57 = arith.constant 8 : i32
    %222 = arith.muli %c7_i32, %c8_i32_57 : i32
    %223 = tpu.assume_multiple %222, 8 : i32
    %224 = arith.index_cast %223 : i32 to index
    %c0_58 = arith.constant 0 : index
    %225 = vector.load %arg5[%224, %c0_58] : memref<64x384xf32, #tpu.memory_space<vmem>>, vector<8x384xf32>
    %c1_59 = arith.constant 1 : index
    %c0_60 = arith.constant 0 : index
    %c0_61 = arith.constant 0 : index
    %226 = vector.load %arg2[%c1_59, %c0_60, %c0_61] : memref<3x128x384xf32, #tpu.memory_space<vmem>>, vector<1x128x384xf32>
    %227 = vector.shape_cast %226 : vector<1x128x384xf32> to vector<128x384xf32>
    %cst_62 = arith.constant dense<0.000000e+00> : vector<8x384xf32>
    %228 = tpu.matmul %221, %227, %cst_62 {dimension_numbers = #tpu.dot_dimension_numbers<[1], [0], [0], [1], [0, 0, 1, 1], [], []>} : vector<8x128xf32>, vector<128x384xf32>, vector<8x384xf32> -> vector<8x384xf32>
    %229 = vector.extract_strided_slice %225 {offsets = [0, 0], sizes = [8, 128], strides = [1, 1]} : vector<8x384xf32> to vector<8x128xf32>
    %230 = vector.extract_strided_slice %228 {offsets = [0, 0], sizes = [8, 128], strides = [1, 1]} : vector<8x384xf32> to vector<8x128xf32>
    %231 = arith.addf %229, %230 : vector<8x128xf32>
    %232 = arith.negf %231 : vector<8x128xf32>
    %233 = math.exp %232 : vector<8x128xf32>
    %cst_63 = arith.constant 1.000000e+00 : f32
    %234 = vector.broadcast %cst_63 : f32 to vector<8x128xf32>
    %235 = arith.addf %234, %233 : vector<8x128xf32>
    %236 = arith.divf %234, %235 : vector<8x128xf32>
    %237 = vector.extract_strided_slice %225 {offsets = [0, 128], sizes = [8, 128], strides = [1, 1]} : vector<8x384xf32> to vector<8x128xf32>
    %238 = vector.extract_strided_slice %228 {offsets = [0, 128], sizes = [8, 128], strides = [1, 1]} : vector<8x384xf32> to vector<8x128xf32>
    %239 = arith.addf %237, %238 : vector<8x128xf32>
    %240 = arith.negf %239 : vector<8x128xf32>
    %241 = math.exp %240 : vector<8x128xf32>
    %cst_64 = arith.constant 1.000000e+00 : f32
    %242 = vector.broadcast %cst_64 : f32 to vector<8x128xf32>
    %243 = arith.addf %242, %241 : vector<8x128xf32>
    %244 = arith.divf %242, %243 : vector<8x128xf32>
    %245 = vector.extract_strided_slice %225 {offsets = [0, 256], sizes = [8, 128], strides = [1, 1]} : vector<8x384xf32> to vector<8x128xf32>
    %246 = vector.extract_strided_slice %228 {offsets = [0, 256], sizes = [8, 128], strides = [1, 1]} : vector<8x384xf32> to vector<8x128xf32>
    %247 = arith.addf %246, %10 : vector<8x128xf32>
    %248 = arith.mulf %236, %247 : vector<8x128xf32>
    %249 = arith.addf %245, %248 : vector<8x128xf32>
    %250 = math.tanh %249 : vector<8x128xf32>
    %251 = arith.subf %221, %250 : vector<8x128xf32>
    %252 = arith.mulf %244, %251 : vector<8x128xf32>
    %253 = arith.addf %250, %252 : vector<8x128xf32>
    %c7_i32_65 = arith.constant 7 : i32
    %c2 = arith.constant 2 : index
    %c0_66 = arith.constant 0 : index
    %c0_67 = arith.constant 0 : index
    %254 = vector.load %arg2[%c2, %c0_66, %c0_67] : memref<3x128x384xf32, #tpu.memory_space<vmem>>, vector<1x128x128xf32>
    %255 = vector.shape_cast %254 : vector<1x128x128xf32> to vector<128x128xf32>
    %cst_68 = arith.constant dense<0.000000e+00> : vector<8x128xf32>
    %256 = tpu.matmul %253, %255, %cst_68 {dimension_numbers = #tpu.dot_dimension_numbers<[1], [0], [0], [1], [0, 0, 1, 1], [], []>} : vector<8x128xf32>, vector<128x128xf32>, vector<8x128xf32> -> vector<8x128xf32>
    %c2_69 = arith.constant 2 : index
    %c0_70 = arith.constant 0 : index
    %257 = vector.load %arg3[%c2_69, %c0_70] : memref<3x384xf32, #tpu.memory_space<vmem>>, vector<1x128xf32>
    %258 = vector.broadcast %257 : vector<1x128xf32> to vector<8x128xf32>
    %259 = arith.addf %256, %258 : vector<8x128xf32>
    %c0_71 = arith.constant 0 : index
    %c0_72 = arith.constant 0 : index
    %260 = vector.load %arg4[%c0_71, %c0_72] : memref<8x128xf32, #tpu.memory_space<vmem>>, vector<8x128xf32>
    tpu.vector_store %arg4[%c0_71, %c0_72], %259 {strides = array<i32>} : memref<8x128xf32, #tpu.memory_space<vmem>>, vector<8x128xf32>,
    return
  }
  func.func @transform_0(%arg0: i32) -> (i32, i32) {
    %c0_i32 = arith.constant 0 : i32
    %c0_i32_0 = arith.constant 0 : i32
    %c0_i32_1 = arith.constant 0 : i32
    return %c0_i32, %c0_i32_0 : i32, i32
  }
  func.func @transform_1(%arg0: i32) -> (i32, i32, i32) {
    %c0_i32 = arith.constant 0 : i32
    %c0_i32_0 = arith.constant 0 : i32
    %c0_i32_1 = arith.constant 0 : i32
    %c0_i32_2 = arith.constant 0 : i32
    return %c0_i32, %c0_i32_0, %c0_i32_1 : i32, i32, i32
  }
  func.func @transform_2(%arg0: i32) -> (i32, i32) {
    %c0_i32 = arith.constant 0 : i32
    %c0_i32_0 = arith.constant 0 : i32
    %c0_i32_1 = arith.constant 0 : i32
    return %c0_i32, %c0_i32_0 : i32, i32
  }
  func.func @transform_3(%arg0: i32) -> (i32, i32) {
    %c0_i32 = arith.constant 0 : i32
    %c0_i32_0 = arith.constant 0 : i32
    %c0_i32_1 = arith.constant 0 : i32
    return %c0_i32, %c0_i32_0 : i32, i32
  }
}

</mosaic_0001>

<llo_original>
// kernel: gru_model_forward.1
$region0: #{gru_model_forward.1}
  #allocation0 [shape = 'u32[]', space=smem, size = 0x4, offset = 0x4, fixed_abs, tag = 'smem constant byte address 0x4 - core index']
  #allocation1 [shape = 'u32[72,128]{1,0:T(1,128)}', space=vmem, size = 0x9000, scoped, tag = 'internal scratch']
  #allocation2 [shape = 'f32[64,384]{1,0:T(8,128)}', space=vmem, size = 0x18000, scoped, tag = 'scratch operand']
  %s0 = inlined_call_operand.vmem [shape: f32[64,128], index: 0, kind: input, shape index: {}]
  %s1 = inlined_call_operand.vmem [shape: f32[3,128,384], index: 1, kind: input, shape index: {}]
  %s2 = inlined_call_operand.vmem [shape: f32[3,384], index: 2, kind: input, shape index: {}]
  %s3 = inlined_call_operand.vmem [shape: f32[8,128], index: 3, kind: output, shape index: {}]
  %s4 = sld [smem:[#allocation0]]
  $region22: #{gru_model_forward.1} parent=0
    _
  %s6 = ssub.s32 1, %s4
  %s7 = scalar_select 0, %s6, %s4
  // Predicated region
  $region2: #{gru_model_forward.1} parent=0 // pred_check
    _
  $region3: #{gru_model_forward.1} parent=0 // pred_check_branch
    %9 = sbr.rel (0) target = $region5
  $region4: #{gru_model_forward.1} parent=0 // pred_region
    _
  $region5: #{gru_model_forward.1} parent=0 // pred_fallthru
    _
  // Predicated region
  $region6: #{gru_model_forward.1} parent=0 // pred_check
    _
  $region7: #{gru_model_forward.1} parent=0 // pred_check_branch
    %11 = sbr.rel (0) target = $region9
  $region8: #{gru_model_forward.1} parent=0 // pred_region
    _
  $region9: #{gru_model_forward.1} parent=0 // pred_fallthru
    _
  // Predicated region
  $region10: #{gru_model_forward.1} parent=0 // pred_check
    _
  $region11: #{gru_model_forward.1} parent=0 // pred_check_branch
    %13 = sbr.rel (0) target = $region13
  $region12: #{gru_model_forward.1} parent=0 // pred_region
    _
  $region13: #{gru_model_forward.1} parent=0 // pred_fallthru
    _
  %v14 = vld [vmem:[%s0] sm:$0xff]
  %v15 = vld [vmem:[%s0 + $0x8] sm:$0xff]
  %v16 = vld [vmem:[%s0 + $0x10] sm:$0xff]
  %v17 = vld [vmem:[%s0 + $0x18] sm:$0xff]
  %v18 = vld [vmem:[%s0 + $0x20] sm:$0xff]
  %v19 = vld [vmem:[%s0 + $0x28] sm:$0xff]
  %v20 = vld [vmem:[%s0 + $0x30] sm:$0xff]
  %v21 = vld [vmem:[%s0 + $0x38] sm:$0xff]
  %v22 = vld [vmem:[%s1] sm:$0xff]
  %v23 = vld [vmem:[%s1 + $0x8] sm:$0xff]
  %v24 = vld [vmem:[%s1 + $0x10] sm:$0xff]
  %v25 = vld [vmem:[%s1 + $0x18] sm:$0xff]
  %v26 = vld [vmem:[%s1 + $0x20] sm:$0xff]
  %v27 = vld [vmem:[%s1 + $0x28] sm:$0xff]
  %v28 = vld [vmem:[%s1 + $0x30] sm:$0xff]
  %v29 = vld [vmem:[%s1 + $0x38] sm:$0xff]
  %v30 = vld [vmem:[%s1 + $0x40] sm:$0xff]
  %v31 = vld [vmem:[%s1 + $0x48] sm:$0xff]
  %v32 = vld [vmem:[%s1 + $0x50] sm:$0xff]
  %v33 = vld [vmem:[%s1 + $0x58] sm:$0xff]
  %v34 = vld [vmem:[%s1 + $0x60] sm:$0xff]
  %v35 = vld [vmem:[%s1 + $0x68] sm:$0xff]
  %v36 = vld [vmem:[%s1 + $0x70] sm:$0xff]
  %v37 = vld [vmem:[%s1 + $0x78] sm:$0xff]
  %v38 = vld [vmem:[%s1 + $0x80] sm:$0xff]
  %v39 = vld [vmem:[%s1 + $0x88] sm:$0xff]
  %v40 = vld [vmem:[%s1 + $0x90] sm:$0xff]
  %v41 = vld [vmem:[%s1 + $0x98] sm:$0xff]
  %v42 = vld [vmem:[%s1 + $0xa0] sm:$0xff]
  %v43 = vld [vmem:[%s1 + $0xa8] sm:$0xff]
  %v44 = vld [vmem:[%s1 + $0xb0] sm:$0xff]
  %v45 = vld [vmem:[%s1 + $0xb8] sm:$0xff]
  %v46 = vld [vmem:[%s1 + $0xc0] sm:$0xff]
  %v47 = vld [vmem:[%s1 + $0xc8] sm:$0xff]
  %v48 = vld [vmem:[%s1 + $0xd0] sm:$0xff]
  %v49 = vld [vmem:[%s1 + $0xd8] sm:$0xff]
  %v50 = vld [vmem:[%s1 + $0xe0] sm:$0xff]
  %v51 = vld [vmem:[%s1 + $0xe8] sm:$0xff]
  %v52 = vld [vmem:[%s1 + $0xf0] sm:$0xff]
  %v53 = vld [vmem:[%s1 + $0xf8] sm:$0xff]
  %v54 = vld [vmem:[%s1 + $0x100] sm:$0xff]
  %v55 = vld [vmem:[%s1 + $0x108] sm:$0xff]
  %v56 = vld [vmem:[%s1 + $0x110] sm:$0xff]
  %v57 = vld [vmem:[%s1 + $0x118] sm:$0xff]
  %v58 = vld [vmem:[%s1 + $0x120] sm:$0xff]
  %v59 = vld [vmem:[%s1 + $0x128] sm:$0xff]
  %v60 = vld [vmem:[%s1 + $0x130] sm:$0xff]
  %v61 = vld [vmem:[%s1 + $0x138] sm:$0xff]
  %v62 = vld [vmem:[%s1 + $0x140] sm:$0xff]
  %v63 = vld [vmem:[%s1 + $0x148] sm:$0xff]
  %v64 = vld [vmem:[%s1 + $0x150] sm:$0xff]
  %v65 = vld [vmem:[%s1 + $0x158] sm:$0xff]
  %v66 = vld [vmem:[%s1 + $0x160] sm:$0xff]
  %v67 = vld [vmem:[%s1 + $0x168] sm:$0xff]
  %v68 = vld [vmem:[%s1 + $0x170] sm:$0xff]
  %v69 = vld [vmem:[%s1 + $0x178] sm:$0xff]
  %v70 = vld [vmem:[%s2] ss:$4 sm:$0x7]
  %v72 = vperm.slane %v70, 0
  %v73 = vperm.slane %v70, 1
  %v74 = vperm.slane %v70, 2
  %78 = vmatpush.msra.mxu0 %v67
  %79 = vmatpush.msra.mxu0 %v64
  %80 = vmatpush.msra.mxu0 %v61
  %81 = vmatpush.msra.mxu0 %v58
  %82 = vmatpush.msra.mxu0 %v55
  %83 = vmatpush.msra.mxu0 %v52
  %84 = vmatpush.msra.mxu0 %v49
  %85 = vmatpush.msra.mxu0 %v46
  %86 = vmatpush.msra.mxu0 %v43
  %87 = vmatpush.msra.mxu0 %v40
  %88 = vmatpush.msra.mxu0 %v37
  %89 = vmatpush.msra.mxu0 %v34
  %90 = vmatpush.msra.mxu0 %v31
  %91 = vmatpush.msra.mxu0 %v28
  %92 = vmatpush.msra.mxu0 %v25
  %93 = vmatpush.msra.mxu0 %v22
  %94 = vmatmul.f32.gmra.mxu0 %v14
  %v95 = vpop.f32.mrf.mxu0
  %v96 = vadd.f32 %v72, %v95
  %97 = vmatmul.f32.gmra.mxu0 %v15
  %v98 = vpop.f32.mrf.mxu0
  %v99 = vadd.f32 %v72, %v98
  %100 = vmatmul.f32.gmra.mxu0 %v16
  %v101 = vpop.f32.mrf.mxu0
  %v102 = vadd.f32 %v72, %v101
  %103 = vmatmul.f32.gmra.mxu0 %v17
  %v104 = vpop.f32.mrf.mxu0
  %v105 = vadd.f32 %v72, %v104
  %106 = vmatmul.f32.gmra.mxu0 %v18
  %v107 = vpop.f32.mrf.mxu0
  %v108 = vadd.f32 %v72, %v107
  %109 = vmatmul.f32.gmra.mxu0 %v19
  %v110 = vpop.f32.mrf.mxu0
  %v111 = vadd.f32 %v72, %v110
  %112 = vmatmul.f32.gmra.mxu0 %v20
  %v113 = vpop.f32.mrf.mxu0
  %v114 = vadd.f32 %v72, %v113
  %115 = vmatmul.f32.gmra.mxu0 %v21
  %v116 = vpop.f32.mrf.mxu0
  %v117 = vadd.f32 %v72, %v116
  %118 = vdwg.mxu0
  %119 = vmatpush.msra.mxu0 %v68
  %120 = vmatpush.msra.mxu0 %v65
  %121 = vmatpush.msra.mxu0 %v62
  %122 = vmatpush.msra.mxu0 %v59
  %123 = vmatpush.msra.mxu0 %v56
  %124 = vmatpush.msra.mxu0 %v53
  %125 = vmatpush.msra.mxu0 %v50
  %126 = vmatpush.msra.mxu0 %v47
  %127 = vmatpush.msra.mxu0 %v44
  %128 = vmatpush.msra.mxu0 %v41
  %129 = vmatpush.msra.mxu0 %v38
  %130 = vmatpush.msra.mxu0 %v35
  %131 = vmatpush.msra.mxu0 %v32
  %132 = vmatpush.msra.mxu0 %v29
  %133 = vmatpush.msra.mxu0 %v26
  %134 = vmatpush.msra.mxu0 %v23
  %135 = vmatmul.f32.gmra.mxu0 %v14
  %v136 = vpop.f32.mrf.mxu0
  %v137 = vadd.f32 %v73, %v136
  %138 = vmatmul.f32.gmra.mxu0 %v15
  %v139 = vpop.f32.mrf.mxu0
  %v140 = vadd.f32 %v73, %v139
  %141 = vmatmul.f32.gmra.mxu0 %v16
  %v142 = vpop.f32.mrf.mxu0
  %v143 = vadd.f32 %v73, %v142
  %144 = vmatmul.f32.gmra.mxu0 %v17
  %v145 = vpop.f32.mrf.mxu0
  %v146 = vadd.f32 %v73, %v145
  %147 = vmatmul.f32.gmra.mxu0 %v18
  %v148 = vpop.f32.mrf.mxu0
  %v149 = vadd.f32 %v73, %v148
  %150 = vmatmul.f32.gmra.mxu0 %v19
  %v151 = vpop.f32.mrf.mxu0
  %v152 = vadd.f32 %v73, %v151
  %153 = vmatmul.f32.gmra.mxu0 %v20
  %v154 = vpop.f32.mrf.mxu0
  %v155 = vadd.f32 %v73, %v154
  %156 = vmatmul.f32.gmra.mxu0 %v21
  %v157 = vpop.f32.mrf.mxu0
  %v158 = vadd.f32 %v73, %v157
  %159 = vdwg.mxu0
  %160 = vmatpush.msra.mxu0 %v69
  %161 = vmatpush.msra.mxu0 %v66
  %162 = vmatpush.msra.mxu0 %v63
  %163 = vmatpush.msra.mxu0 %v60
  %164 = vmatpush.msra.mxu0 %v57
  %165 = vmatpush.msra.mxu0 %v54
  %166 = vmatpush.msra.mxu0 %v51
  %167 = vmatpush.msra.mxu0 %v48
  %168 = vmatpush.msra.mxu0 %v45
  %169 = vmatpush.msra.mxu0 %v42
  %170 = vmatpush.msra.mxu0 %v39
  %171 = vmatpush.msra.mxu0 %v36
  %172 = vmatpush.msra.mxu0 %v33
  %173 = vmatpush.msra.mxu0 %v30
  %174 = vmatpush.msra.mxu0 %v27
  %175 = vmatpush.msra.mxu0 %v24
  %176 = vmatmul.f32.gmra.mxu0 %v14
  %v177 = vpop.f32.mrf.mxu0
  %v178 = vadd.f32 %v74, %v177
  %179 = vmatmul.f32.gmra.mxu0 %v15
  %v180 = vpop.f32.mrf.mxu0
  %v181 = vadd.f32 %v74, %v180
  %182 = vmatmul.f32.gmra.mxu0 %v16
  %v183 = vpop.f32.mrf.mxu0
  %v184 = vadd.f32 %v74, %v183
  %185 = vmatmul.f32.gmra.mxu0 %v17
  %v186 = vpop.f32.mrf.mxu0
  %v187 = vadd.f32 %v74, %v186
  %188 = vmatmul.f32.gmra.mxu0 %v18
  %v189 = vpop.f32.mrf.mxu0
  %v190 = vadd.f32 %v74, %v189
  %191 = vmatmul.f32.gmra.mxu0 %v19
  %v192 = vpop.f32.mrf.mxu0
  %v193 = vadd.f32 %v74, %v192
  %194 = vmatmul.f32.gmra.mxu0 %v20
  %v195 = vpop.f32.mrf.mxu0
  %v196 = vadd.f32 %v74, %v195
  %197 = vmatmul.f32.gmra.mxu0 %v21
  %v198 = vpop.f32.mrf.mxu0
  %v199 = vadd.f32 %v74, %v198
  %200 = vdwg.mxu0
  %201 = vst [vmem:[#allocation2] sm:$0xff] %v96
  %202 = vst [vmem:[#allocation2 + $0x8] sm:$0xff] %v137
  %203 = vst [vmem:[#allocation2 + $0x10] sm:$0xff] %v178
  %204 = vst [vmem:[#allocation2 + $0x18] sm:$0xff] %v99
  %205 = vst [vmem:[#allocation2 + $0x20] sm:$0xff] %v140
  %206 = vst [vmem:[#allocation2 + $0x28] sm:$0xff] %v181
  %207 = vst [vmem:[#allocation2 + $0x30] sm:$0xff] %v102
  %208 = vst [vmem:[#allocation2 + $0x38] sm:$0xff] %v143
  %209 = vst [vmem:[#allocation2 + $0x40] sm:$0xff] %v184
  %210 = vst [vmem:[#allocation2 + $0x48] sm:$0xff] %v105
  %211 = vst [vmem:[#allocation2 + $0x50] sm:$0xff] %v146
  %212 = vst [vmem:[#allocation2 + $0x58] sm:$0xff] %v187
  %213 = vst [vmem:[#allocation2 + $0x60] sm:$0xff] %v108
  %214 = vst [vmem:[#allocation2 + $0x68] sm:$0xff] %v149
  %215 = vst [vmem:[#allocation2 + $0x70] sm:$0xff] %v190
  %216 = vst [vmem:[#allocation2 + $0x78] sm:$0xff] %v111
  %217 = vst [vmem:[#allocation2 + $0x80] sm:$0xff] %v152
  %218 = vst [vmem:[#allocation2 + $0x88] sm:$0xff] %v193
  %219 = vst [vmem:[#allocation2 + $0x90] sm:$0xff] %v114
  %220 = vst [vmem:[#allocation2 + $0x98] sm:$0xff] %v155
  %221 = vst [vmem:[#allocation2 + $0xa0] sm:$0xff] %v196
  %222 = vst [vmem:[#allocation2 + $0xa8] sm:$0xff] %v117
  %223 = vst [vmem:[#allocation2 + $0xb0] sm:$0xff] %v158
  %224 = vst [vmem:[#allocation2 + $0xb8] sm:$0xff] %v199
  %v225 = vld [vmem:[%s2 + $0x9] sm:$0x1]
  %v226 = vperm.slane %v225, 0
  %v227 = vxor.u32 %v96, 2147483648
  %v228 = vmul.f32 %v227, 1.442695
  %v229 = vpow.pop %v228
  %v230 = vadd.f32 %v229, 1.0
  %v231 = vrcp.pop %v230
  %v232 = vmul.f32 %v230, %v231
  %v233 = vsub.f32 1.0, %v232
  %v234 = vmul.f32 %v231, %v233
  %v235 = vadd.f32 %v231, %v234
  %vm236 = vweird.f32 %v230
  %vm237 = vweird.f32 %v231
  %vm238 = vmor %vm236, %vm237
  %v239 = vsel %vm238, %v231, %v235
  %v240 = vand.u32 2147483647, %v230
  %vm241 = vcmp.eq.f32.partialorder %v240, 8.507059e+37
  %v242 = vand.u32 %v230, 2147483648
  %v243 = vor.u32 1.1754944e-38, %v242
  %v244 = vsel %vm241, %v243, %v239
  %v245 = vmul.f32 1.0, %v244
  %v246 = vxor.u32 %v137, 2147483648
  %v247 = vmul.f32 %v246, 1.442695
  %v248 = vpow.pop %v247
  %v249 = vadd.f32 %v248, 1.0
  %v250 = vrcp.pop %v249
  %v251 = vmul.f32 %v249, %v250
  %v252 = vsub.f32 1.0, %v251
  %v253 = vmul.f32 %v250, %v252
  %v254 = vadd.f32 %v250, %v253
  %vm255 = vweird.f32 %v249
  %vm256 = vweird.f32 %v250
  %vm257 = vmor %vm255, %vm256
  %v258 = vsel %vm257, %v250, %v254
  %v259 = vand.u32 2147483647, %v249
  %vm260 = vcmp.eq.f32.partialorder %v259, 8.507059e+37
  %v261 = vand.u32 %v249, 2147483648
  %v262 = vor.u32 1.1754944e-38, %v261
  %v263 = vsel %vm260, %v262, %v258
  %v264 = vmul.f32 1.0, %v263
  %v265 = vmul.f32 %v245, %v226
  %v266 = vadd.f32 %v178, %v265
  %v267 = vtanh.pop %v266
  %v268 = vmul.f32 %v264, %v267
  %v269 = vsub.f32 %v267, %v268
  %s270 = smul.u32 1, 3
  %s271 = smul.addr %s270, 8
  %s272 = scalar_lea.vmem [#allocation2], %s271
  %v273 = vld [vmem:[%s272] sm:$0xff]
  %v274 = vld [vmem:[%s272 + $0x8] sm:$0xff]
  %v275 = vld [vmem:[%s272 + $0x10] sm:$0xff]
  %s276 = scalar_lea.vmem %s1, 384
  %v277 = vld [vmem:[%s276] sm:$0xff]
  %v278 = vld [vmem:[%s276 + $0x8] sm:$0xff]
  %v279 = vld [vmem:[%s276 + $0x10] sm:$0xff]
  %v280 = vld [vmem:[%s276 + $0x18] sm:$0xff]
  %v281 = vld [vmem:[%s276 + $0x20] sm:$0xff]
  %v282 = vld [vmem:[%s276 + $0x28] sm:$0xff]
  %v283 = vld [vmem:[%s276 + $0x30] sm:$0xff]
  %v284 = vld [vmem:[%s276 + $0x38] sm:$0xff]
  %v285 = vld [vmem:[%s276 + $0x40] sm:$0xff]
  %v286 = vld [vmem:[%s276 + $0x48] sm:$0xff]
  %v287 = vld [vmem:[%s276 + $0x50] sm:$0xff]
  %v288 = vld [vmem:[%s276 + $0x58] sm:$0xff]
  %v289 = vld [vmem:[%s276 + $0x60] sm:$0xff]
  %v290 = vld [vmem:[%s276 + $0x68] sm:$0xff]
  %v291 = vld [vmem:[%s276 + $0x70] sm:$0xff]
  %v292 = vld [vmem:[%s276 + $0x78] sm:$0xff]
  %v293 = vld [vmem:[%s276 + $0x80] sm:$0xff]
  %v294 = vld [vmem:[%s276 + $0x88] sm:$0xff]
  %v295 = vld [vmem:[%s276 + $0x90] sm:$0xff]
  %v296 = vld [vmem:[%s276 + $0x98] sm:$0xff]
  %v297 = vld [vmem:[%s276 + $0xa0] sm:$0xff]
  %v298 = vld [vmem:[%s276 + $0xa8] sm:$0xff]
  %v299 = vld [vmem:[%s276 + $0xb0] sm:$0xff]
  %v300 = vld [vmem:[%s276 + $0xb8] sm:$0xff]
  %v301 = vld [vmem:[%s276 + $0xc0] sm:$0xff]
  %v302 = vld [vmem:[%s276 + $0xc8] sm:$0xff]
  %v303 = vld [vmem:[%s276 + $0xd0] sm:$0xff]
  %v304 = vld [vmem:[%s276 + $0xd8] sm:$0xff]
  %v305 = vld [vmem:[%s276 + $0xe0] sm:$0xff]
  %v306 = vld [vmem:[%s276 + $0xe8] sm:$0xff]
  %v307 = vld [vmem:[%s276 + $0xf0] sm:$0xff]
  %v308 = vld [vmem:[%s276 + $0xf8] sm:$0xff]
  %v309 = vld [vmem:[%s276 + $0x100] sm:$0xff]
  %v310 = vld [vmem:[%s276 + $0x108] sm:$0xff]
  %v311 = vld [vmem:[%s276 + $0x110] sm:$0xff]
  %v312 = vld [vmem:[%s276 + $0x118] sm:$0xff]
  %v313 = vld [vmem:[%s276 + $0x120] sm:$0xff]
  %v314 = vld [vmem:[%s276 + $0x128] sm:$0xff]
  %v315 = vld [vmem:[%s276 + $0x130] sm:$0xff]
  %v316 = vld [vmem:[%s276 + $0x138] sm:$0xff]
  %v317 = vld [vmem:[%s276 + $0x140] sm:$0xff]
  %v318 = vld [vmem:[%s276 + $0x148] sm:$0xff]
  %v319 = vld [vmem:[%s276 + $0x150] sm:$0xff]
  %v320 = vld [vmem:[%s276 + $0x158] sm:$0xff]
  %v321 = vld [vmem:[%s276 + $0x160] sm:$0xff]
  %v322 = vld [vmem:[%s276 + $0x168] sm:$0xff]
  %v323 = vld [vmem:[%s276 + $0x170] sm:$0xff]
  %v324 = vld [vmem:[%s276 + $0x178] sm:$0xff]
  %325 = vmatpush.msra.mxu0 %v322
  %326 = vmatpush.msra.mxu0 %v319
  %327 = vmatpush.msra.mxu0 %v316
  %328 = vmatpush.msra.mxu0 %v313
  %329 = vmatpush.msra.mxu0 %v310
  %330 = vmatpush.msra.mxu0 %v307
  %331 = vmatpush.msra.mxu0 %v304
  %332 = vmatpush.msra.mxu0 %v301
  %333 = vmatpush.msra.mxu0 %v298
  %334 = vmatpush.msra.mxu0 %v295
  %335 = vmatpush.msra.mxu0 %v292
  %336 = vmatpush.msra.mxu0 %v289
  %337 = vmatpush.msra.mxu0 %v286
  %338 = vmatpush.msra.mxu0 %v283
  %339 = vmatpush.msra.mxu0 %v280
  %340 = vmatpush.msra.mxu0 %v277
  %341 = vmatmul.f32.gmra.mxu0 %v269
  %v342 = vpop.f32.mrf.mxu0
  %v343 = vadd.f32 0.0, %v342
  %344 = vdwg.mxu0
  %345 = vmatpush.msra.mxu0 %v323
  %346 = vmatpush.msra.mxu0 %v320
  %347 = vmatpush.msra.mxu0 %v317
  %348 = vmatpush.msra.mxu0 %v314
  %349 = vmatpush.msra.mxu0 %v311
  %350 = vmatpush.msra.mxu0 %v308
  %351 = vmatpush.msra.mxu0 %v305
  %352 = vmatpush.msra.mxu0 %v302
  %353 = vmatpush.msra.mxu0 %v299
  %354 = vmatpush.msra.mxu0 %v296
  %355 = vmatpush.msra.mxu0 %v293
  %356 = vmatpush.msra.mxu0 %v290
  %357 = vmatpush.msra.mxu0 %v287
  %358 = vmatpush.msra.mxu0 %v284
  %359 = vmatpush.msra.mxu0 %v281
  %360 = vmatpush.msra.mxu0 %v278
  %361 = vmatmul.f32.gmra.mxu0 %v269
  %v362 = vpop.f32.mrf.mxu0
  %v363 = vadd.f32 0.0, %v362
  %364 = vdwg.mxu0
  %365 = vmatpush.msra.mxu0 %v324
  %366 = vmatpush.msra.mxu0 %v321
  %367 = vmatpush.msra.mxu0 %v318
  %368 = vmatpush.msra.mxu0 %v315
  %369 = vmatpush.msra.mxu0 %v312
  %370 = vmatpush.msra.mxu0 %v309
  %371 = vmatpush.msra.mxu0 %v306
  %372 = vmatpush.msra.mxu0 %v303
  %373 = vmatpush.msra.mxu0 %v300
  %374 = vmatpush.msra.mxu0 %v297
  %375 = vmatpush.msra.mxu0 %v294
  %376 = vmatpush.msra.mxu0 %v291
  %377 = vmatpush.msra.mxu0 %v288
  %378 = vmatpush.msra.mxu0 %v285
  %379 = vmatpush.msra.mxu0 %v282
  %380 = vmatpush.msra.mxu0 %v279
  %381 = vmatmul.f32.gmra.mxu0 %v269
  %v382 = vpop.f32.mrf.mxu0
  %v383 = vadd.f32 0.0, %v382
  %384 = vdwg.mxu0
  %v385 = vadd.f32 %v273, %v343
  %v386 = vxor.u32 %v385, 2147483648
  %v387 = vmul.f32 %v386, 1.442695
  %v388 = vpow.pop %v387
  %v389 = vadd.f32 %v388, 1.0
  %v390 = vrcp.pop %v389
  %v391 = vmul.f32 %v389, %v390
  %v392 = vsub.f32 1.0, %v391
  %v393 = vmul.f32 %v390, %v392
  %v394 = vadd.f32 %v390, %v393
  %vm395 = vweird.f32 %v389
  %vm396 = vweird.f32 %v390
  %vm397 = vmor %vm395, %vm396
  %v398 = vsel %vm397, %v390, %v394
  %v399 = vand.u32 2147483647, %v389
  %vm400 = vcmp.eq.f32.partialorder %v399, 8.507059e+37
  %v401 = vand.u32 %v389, 2147483648
  %v402 = vor.u32 1.1754944e-38, %v401
  %v403 = vsel %vm400, %v402, %v398
  %v404 = vmul.f32 1.0, %v403
  %v405 = vadd.f32 %v274, %v363
  %v406 = vxor.u32 %v405, 2147483648
  %v407 = vmul.f32 %v406, 1.442695
  %v408 = vpow.pop %v407
  %v409 = vadd.f32 %v408, 1.0
  %v410 = vrcp.pop %v409
  %v411 = vmul.f32 %v409, %v410
  %v412 = vsub.f32 1.0, %v411
  %v413 = vmul.f32 %v410, %v412
  %v414 = vadd.f32 %v410, %v413
  %vm415 = vweird.f32 %v409
  %vm416 = vweird.f32 %v410
  %vm417 = vmor %vm415, %vm416
  %v418 = vsel %vm417, %v410, %v414
  %v419 = vand.u32 2147483647, %v409
  %vm420 = vcmp.eq.f32.partialorder %v419, 8.507059e+37
  %v421 = vand.u32 %v409, 2147483648
  %v422 = vor.u32 1.1754944e-38, %v421
  %v423 = vsel %vm420, %v422, %v418
  %v424 = vmul.f32 1.0, %v423
  %v425 = vadd.f32 %v383, %v226
  %v426 = vmul.f32 %v404, %v425
  %v427 = vadd.f32 %v275, %v426
  %v428 = vtanh.pop %v427
  %v429 = vsub.f32 %v269, %v428
  %v430 = vmul.f32 %v424, %v429
  %v431 = vadd.f32 %v428, %v430
  %s432 = smul.u32 2, 3
  %s433 = smul.addr %s432, 8
  %s434 = scalar_lea.vmem [#allocation2], %s433
  %v435 = vld [vmem:[%s434] sm:$0xff]
  %v436 = vld [vmem:[%s434 + $0x8] sm:$0xff]
  %v437 = vld [vmem:[%s434 + $0x10] sm:$0xff]
  %438 = vmatpush.msra.mxu0 %v322
  %439 = vmatpush.msra.mxu0 %v319
  %440 = vmatpush.msra.mxu0 %v316
  %441 = vmatpush.msra.mxu0 %v313
  %442 = vmatpush.msra.mxu0 %v310
  %443 = vmatpush.msra.mxu0 %v307
  %444 = vmatpush.msra.mxu0 %v304
  %445 = vmatpush.msra.mxu0 %v301
  %446 = vmatpush.msra.mxu0 %v298
  %447 = vmatpush.msra.mxu0 %v295
  %448 = vmatpush.msra.mxu0 %v292
  %449 = vmatpush.msra.mxu0 %v289
  %450 = vmatpush.msra.mxu0 %v286
  %451 = vmatpush.msra.mxu0 %v283
  %452 = vmatpush.msra.mxu0 %v280
  %453 = vmatpush.msra.mxu0 %v277
  %454 = vmatmul.f32.gmra.mxu0 %v431
  %v455 = vpop.f32.mrf.mxu0
  %v456 = vadd.f32 0.0, %v455
  %457 = vdwg.mxu0
  %458 = vmatpush.msra.mxu0 %v323
  %459 = vmatpush.msra.mxu0 %v320
  %460 = vmatpush.msra.mxu0 %v317
  %461 = vmatpush.msra.mxu0 %v314
  %462 = vmatpush.msra.mxu0 %v311
  %463 = vmatpush.msra.mxu0 %v308
  %464 = vmatpush.msra.mxu0 %v305
  %465 = vmatpush.msra.mxu0 %v302
  %466 = vmatpush.msra.mxu0 %v299
  %467 = vmatpush.msra.mxu0 %v296
  %468 = vmatpush.msra.mxu0 %v293
  %469 = vmatpush.msra.mxu0 %v290
  %470 = vmatpush.msra.mxu0 %v287
  %471 = vmatpush.msra.mxu0 %v284
  %472 = vmatpush.msra.mxu0 %v281
  %473 = vmatpush.msra.mxu0 %v278
  %474 = vmatmul.f32.gmra.mxu0 %v431
  %v475 = vpop.f32.mrf.mxu0
  %v476 = vadd.f32 0.0, %v475
  %477 = vdwg.mxu0
  %478 = vmatpush.msra.mxu0 %v324
  %479 = vmatpush.msra.mxu0 %v321
  %480 = vmatpush.msra.mxu0 %v318
  %481 = vmatpush.msra.mxu0 %v315
  %482 = vmatpush.msra.mxu0 %v312
  %483 = vmatpush.msra.mxu0 %v309
  %484 = vmatpush.msra.mxu0 %v306
  %485 = vmatpush.msra.mxu0 %v303
  %486 = vmatpush.msra.mxu0 %v300
  %487 = vmatpush.msra.mxu0 %v297
  %488 = vmatpush.msra.mxu0 %v294
  %489 = vmatpush.msra.mxu0 %v291
  %490 = vmatpush.msra.mxu0 %v288
  %491 = vmatpush.msra.mxu0 %v285
  %492 = vmatpush.msra.mxu0 %v282
  %493 = vmatpush.msra.mxu0 %v279
  %494 = vmatmul.f32.gmra.mxu0 %v431
  %v495 = vpop.f32.mrf.mxu0
  %v496 = vadd.f32 0.0, %v495
  %497 = vdwg.mxu0
  %v498 = vadd.f32 %v435, %v456
  %v499 = vxor.u32 %v498, 2147483648
  %v500 = vmul.f32 %v499, 1.442695
  %v501 = vpow.pop %v500
  %v502 = vadd.f32 %v501, 1.0
  %v503 = vrcp.pop %v502
  %v504 = vmul.f32 %v502, %v503
  %v505 = vsub.f32 1.0, %v504
  %v506 = vmul.f32 %v503, %v505
  %v507 = vadd.f32 %v503, %v506
  %vm508 = vweird.f32 %v502
  %vm509 = vweird.f32 %v503
  %vm510 = vmor %vm508, %vm509
  %v511 = vsel %vm510, %v503, %v507
  %v512 = vand.u32 2147483647, %v502
  %vm513 = vcmp.eq.f32.partialorder %v512, 8.507059e+37
  %v514 = vand.u32 %v502, 2147483648
  %v515 = vor.u32 1.1754944e-38, %v514
  %v516 = vsel %vm513, %v515, %v511
  %v517 = vmul.f32 1.0, %v516
  %v518 = vadd.f32 %v436, %v476
  %v519 = vxor.u32 %v518, 2147483648
  %v520 = vmul.f32 %v519, 1.442695
  %v521 = vpow.pop %v520
  %v522 = vadd.f32 %v521, 1.0
  %v523 = vrcp.pop %v522
  %v524 = vmul.f32 %v522, %v523
  %v525 = vsub.f32 1.0, %v524
  %v526 = vmul.f32 %v523, %v525
  %v527 = vadd.f32 %v523, %v526
  %vm528 = vweird.f32 %v522
  %vm529 = vweird.f32 %v523
  %vm530 = vmor %vm528, %vm529
  %v531 = vsel %vm530, %v523, %v527
  %v532 = vand.u32 2147483647, %v522
  %vm533 = vcmp.eq.f32.partialorder %v532, 8.507059e+37
  %v534 = vand.u32 %v522, 2147483648
  %v535 = vor.u32 1.1754944e-38, %v534
  %v536 = vsel %vm533, %v535, %v531
  %v537 = vmul.f32 1.0, %v536
  %v538 = vadd.f32 %v496, %v226
  %v539 = vmul.f32 %v517, %v538
  %v540 = vadd.f32 %v437, %v539
  %v541 = vtanh.pop %v540
  %v542 = vsub.f32 %v431, %v541
  %v543 = vmul.f32 %v537, %v542
  %v544 = vadd.f32 %v541, %v543
  %s545 = smul.u32 3, 3
  %s546 = smul.addr %s545, 8
  %s547 = scalar_lea.vmem [#allocation2], %s546
  %v548 = vld [vmem:[%s547] sm:$0xff]
  %v549 = vld [vmem:[%s547 + $0x8] sm:$0xff]
  %v550 = vld [vmem:[%s547 + $0x10] sm:$0xff]
  %551 = vmatpush.msra.mxu0 %v322
  %552 = vmatpush.msra.mxu0 %v319
  %553 = vmatpush.msra.mxu0 %v316
  %554 = vmatpush.msra.mxu0 %v313
  %555 = vmatpush.msra.mxu0 %v310
  %556 = vmatpush.msra.mxu0 %v307
  %557 = vmatpush.msra.mxu0 %v304
  %558 = vmatpush.msra.mxu0 %v301
  %559 = vmatpush.msra.mxu0 %v298
  %560 = vmatpush.msra.mxu0 %v295
  %561 = vmatpush.msra.mxu0 %v292
  %562 = vmatpush.msra.mxu0 %v289
  %563 = vmatpush.msra.mxu0 %v286
  %564 = vmatpush.msra.mxu0 %v283
  %565 = vmatpush.msra.mxu0 %v280
  %566 = vmatpush.msra.mxu0 %v277
  %567 = vmatmul.f32.gmra.mxu0 %v544
  %v568 = vpop.f32.mrf.mxu0
  %v569 = vadd.f32 0.0, %v568
  %570 = vdwg.mxu0
  %571 = vmatpush.msra.mxu0 %v323
  %572 = vmatpush.msra.mxu0 %v320
  %573 = vmatpush.msra.mxu0 %v317
  %574 = vmatpush.msra.mxu0 %v314
  %575 = vmatpush.msra.mxu0 %v311
  %576 = vmatpush.msra.mxu0 %v308
  %577 = vmatpush.msra.mxu0 %v305
  %578 = vmatpush.msra.mxu0 %v302
  %579 = vmatpush.msra.mxu0 %v299
  %580 = vmatpush.msra.mxu0 %v296
  %581 = vmatpush.msra.mxu0 %v293
  %582 = vmatpush.msra.mxu0 %v290
  %583 = vmatpush.msra.mxu0 %v287
  %584 = vmatpush.msra.mxu0 %v284
  %585 = vmatpush.msra.mxu0 %v281
  %586 = vmatpush.msra.mxu0 %v278
  %587 = vmatmul.f32.gmra.mxu0 %v544
  %v588 = vpop.f32.mrf.mxu0
  %v589 = vadd.f32 0.0, %v588
  %590 = vdwg.mxu0
  %591 = vmatpush.msra.mxu0 %v324
  %592 = vmatpush.msra.mxu0 %v321
  %593 = vmatpush.msra.mxu0 %v318
  %594 = vmatpush.msra.mxu0 %v315
  %595 = vmatpush.msra.mxu0 %v312
  %596 = vmatpush.msra.mxu0 %v309
  %597 = vmatpush.msra.mxu0 %v306
  %598 = vmatpush.msra.mxu0 %v303
  %599 = vmatpush.msra.mxu0 %v300
  %600 = vmatpush.msra.mxu0 %v297
  %601 = vmatpush.msra.mxu0 %v294
  %602 = vmatpush.msra.mxu0 %v291
  %603 = vmatpush.msra.mxu0 %v288
  %604 = vmatpush.msra.mxu0 %v285
  %605 = vmatpush.msra.mxu0 %v282
  %606 = vmatpush.msra.mxu0 %v279
  %607 = vmatmul.f32.gmra.mxu0 %v544
  %v608 = vpop.f32.mrf.mxu0
  %v609 = vadd.f32 0.0, %v608
  %610 = vdwg.mxu0
  %v611 = vadd.f32 %v548, %v569
  %v612 = vxor.u32 %v611, 2147483648
  %v613 = vmul.f32 %v612, 1.442695
  %v614 = vpow.pop %v613
  %v615 = vadd.f32 %v614, 1.0
  %v616 = vrcp.pop %v615
  %v617 = vmul.f32 %v615, %v616
  %v618 = vsub.f32 1.0, %v617
  %v619 = vmul.f32 %v616, %v618
  %v620 = vadd.f32 %v616, %v619
  %vm621 = vweird.f32 %v615
  %vm622 = vweird.f32 %v616
  %vm623 = vmor %vm621, %vm622
  %v624 = vsel %vm623, %v616, %v620
  %v625 = vand.u32 2147483647, %v615
  %vm626 = vcmp.eq.f32.partialorder %v625, 8.507059e+37
  %v627 = vand.u32 %v615, 2147483648
  %v628 = vor.u32 1.1754944e-38, %v627
  %v629 = vsel %vm626, %v628, %v624
  %v630 = vmul.f32 1.0, %v629
  %v631 = vadd.f32 %v549, %v589
  %v632 = vxor.u32 %v631, 2147483648
  %v633 = vmul.f32 %v632, 1.442695
  %v634 = vpow.pop %v633
  %v635 = vadd.f32 %v634, 1.0
  %v636 = vrcp.pop %v635
  %v637 = vmul.f32 %v635, %v636
  %v638 = vsub.f32 1.0, %v637
  %v639 = vmul.f32 %v636, %v638
  %v640 = vadd.f32 %v636, %v639
  %vm641 = vweird.f32 %v635
  %vm642 = vweird.f32 %v636
  %vm643 = vmor %vm641, %vm642
  %v644 = vsel %vm643, %v636, %v640
  %v645 = vand.u32 2147483647, %v635
  %vm646 = vcmp.eq.f32.partialorder %v645, 8.507059e+37
  %v647 = vand.u32 %v635, 2147483648
  %v648 = vor.u32 1.1754944e-38, %v647
  %v649 = vsel %vm646, %v648, %v644
  %v650 = vmul.f32 1.0, %v649
  %v651 = vadd.f32 %v609, %v226
  %v652 = vmul.f32 %v630, %v651
  %v653 = vadd.f32 %v550, %v652
  %v654 = vtanh.pop %v653
  %v655 = vsub.f32 %v544, %v654
  %v656 = vmul.f32 %v650, %v655
  %v657 = vadd.f32 %v654, %v656
  %s658 = smul.u32 4, 3
  %s659 = smul.addr %s658, 8
  %s660 = scalar_lea.vmem [#allocation2], %s659
  %v661 = vld [vmem:[%s660] sm:$0xff]
  %v662 = vld [vmem:[%s660 + $0x8] sm:$0xff]
  %v663 = vld [vmem:[%s660 + $0x10] sm:$0xff]
  %664 = vmatpush.msra.mxu0 %v322
  %665 = vmatpush.msra.mxu0 %v319
  %666 = vmatpush.msra.mxu0 %v316
  %667 = vmatpush.msra.mxu0 %v313
  %668 = vmatpush.msra.mxu0 %v310
  %669 = vmatpush.msra.mxu0 %v307
  %670 = vmatpush.msra.mxu0 %v304
  %671 = vmatpush.msra.mxu0 %v301
  %672 = vmatpush.msra.mxu0 %v298
  %673 = vmatpush.msra.mxu0 %v295
  %674 = vmatpush.msra.mxu0 %v292
  %675 = vmatpush.msra.mxu0 %v289
  %676 = vmatpush.msra.mxu0 %v286
  %677 = vmatpush.msra.mxu0 %v283
  %678 = vmatpush.msra.mxu0 %v280
  %679 = vmatpush.msra.mxu0 %v277
  %680 = vmatmul.f32.gmra.mxu0 %v657
  %v681 = vpop.f32.mrf.mxu0
  %v682 = vadd.f32 0.0, %v681
  %683 = vdwg.mxu0
  %684 = vmatpush.msra.mxu0 %v323
  %685 = vmatpush.msra.mxu0 %v320
  %686 = vmatpush.msra.mxu0 %v317
  %687 = vmatpush.msra.mxu0 %v314
  %688 = vmatpush.msra.mxu0 %v311
  %689 = vmatpush.msra.mxu0 %v308
  %690 = vmatpush.msra.mxu0 %v305
  %691 = vmatpush.msra.mxu0 %v302
  %692 = vmatpush.msra.mxu0 %v299
  %693 = vmatpush.msra.mxu0 %v296
  %694 = vmatpush.msra.mxu0 %v293
  %695 = vmatpush.msra.mxu0 %v290
  %696 = vmatpush.msra.mxu0 %v287
  %697 = vmatpush.msra.mxu0 %v284
  %698 = vmatpush.msra.mxu0 %v281
  %699 = vmatpush.msra.mxu0 %v278
  %700 = vmatmul.f32.gmra.mxu0 %v657
  %v701 = vpop.f32.mrf.mxu0
  %v702 = vadd.f32 0.0, %v701
  %703 = vdwg.mxu0
  %704 = vmatpush.msra.mxu0 %v324
  %705 = vmatpush.msra.mxu0 %v321
  %706 = vmatpush.msra.mxu0 %v318
  %707 = vmatpush.msra.mxu0 %v315
  %708 = vmatpush.msra.mxu0 %v312
  %709 = vmatpush.msra.mxu0 %v309
  %710 = vmatpush.msra.mxu0 %v306
  %711 = vmatpush.msra.mxu0 %v303
  %712 = vmatpush.msra.mxu0 %v300
  %713 = vmatpush.msra.mxu0 %v297
  %714 = vmatpush.msra.mxu0 %v294
  %715 = vmatpush.msra.mxu0 %v291
  %716 = vmatpush.msra.mxu0 %v288
  %717 = vmatpush.msra.mxu0 %v285
  %718 = vmatpush.msra.mxu0 %v282
  %719 = vmatpush.msra.mxu0 %v279
  %720 = vmatmul.f32.gmra.mxu0 %v657
  %v721 = vpop.f32.mrf.mxu0
  %v722 = vadd.f32 0.0, %v721
  %723 = vdwg.mxu0
  %v724 = vadd.f32 %v661, %v682
  %v725 = vxor.u32 %v724, 2147483648
  %v726 = vmul.f32 %v725, 1.442695
  %v727 = vpow.pop %v726
  %v728 = vadd.f32 %v727, 1.0
  %v729 = vrcp.pop %v728
  %v730 = vmul.f32 %v728, %v729
  %v731 = vsub.f32 1.0, %v730
  %v732 = vmul.f32 %v729, %v731
  %v733 = vadd.f32 %v729, %v732
  %vm734 = vweird.f32 %v728
  %vm735 = vweird.f32 %v729
  %vm736 = vmor %vm734, %vm735
  %v737 = vsel %vm736, %v729, %v733
  %v738 = vand.u32 2147483647, %v728
  %vm739 = vcmp.eq.f32.partialorder %v738, 8.507059e+37
  %v740 = vand.u32 %v728, 2147483648
  %v741 = vor.u32 1.1754944e-38, %v740
  %v742 = vsel %vm739, %v741, %v737
  %v743 = vmul.f32 1.0, %v742
  %v744 = vadd.f32 %v662, %v702
  %v745 = vxor.u32 %v744, 2147483648
  %v746 = vmul.f32 %v745, 1.442695
  %v747 = vpow.pop %v746
  %v748 = vadd.f32 %v747, 1.0
  %v749 = vrcp.pop %v748
  %v750 = vmul.f32 %v748, %v749
  %v751 = vsub.f32 1.0, %v750
  %v752 = vmul.f32 %v749, %v751
  %v753 = vadd.f32 %v749, %v752
  %vm754 = vweird.f32 %v748
  %vm755 = vweird.f32 %v749
  %vm756 = vmor %vm754, %vm755
  %v757 = vsel %vm756, %v749, %v753
  %v758 = vand.u32 2147483647, %v748
  %vm759 = vcmp.eq.f32.partialorder %v758, 8.507059e+37
  %v760 = vand.u32 %v748, 2147483648
  %v761 = vor.u32 1.1754944e-38, %v760
  %v762 = vsel %vm759, %v761, %v757
  %v763 = vmul.f32 1.0, %v762
  %v764 = vadd.f32 %v722, %v226
  %v765 = vmul.f32 %v743, %v764
  %v766 = vadd.f32 %v663, %v765
  %v767 = vtanh.pop %v766
  %v768 = vsub.f32 %v657, %v767
  %v769 = vmul.f32 %v763, %v768
  %v770 = vadd.f32 %v767, %v769
  %s771 = smul.u32 5, 3
  %s772 = smul.addr %s771, 8
  %s773 = scalar_lea.vmem [#allocation2], %s772
  %v774 = vld [vmem:[%s773] sm:$0xff]
  %v775 = vld [vmem:[%s773 + $0x8] sm:$0xff]
  %v776 = vld [vmem:[%s773 + $0x10] sm:$0xff]
  %777 = vmatpush.msra.mxu0 %v322
  %778 = vmatpush.msra.mxu0 %v319
  %779 = vmatpush.msra.mxu0 %v316
  %780 = vmatpush.msra.mxu0 %v313
  %781 = vmatpush.msra.mxu0 %v310
  %782 = vmatpush.msra.mxu0 %v307
  %783 = vmatpush.msra.mxu0 %v304
  %784 = vmatpush.msra.mxu0 %v301
  %785 = vmatpush.msra.mxu0 %v298
  %786 = vmatpush.msra.mxu0 %v295
  %787 = vmatpush.msra.mxu0 %v292
  %788 = vmatpush.msra.mxu0 %v289
  %789 = vmatpush.msra.mxu0 %v286
  %790 = vmatpush.msra.mxu0 %v283
  %791 = vmatpush.msra.mxu0 %v280
  %792 = vmatpush.msra.mxu0 %v277
  %793 = vmatmul.f32.gmra.mxu0 %v770
  %v794 = vpop.f32.mrf.mxu0
  %v795 = vadd.f32 0.0, %v794
  %796 = vdwg.mxu0
  %797 = vmatpush.msra.mxu0 %v323
  %798 = vmatpush.msra.mxu0 %v320
  %799 = vmatpush.msra.mxu0 %v317
  %800 = vmatpush.msra.mxu0 %v314
  %801 = vmatpush.msra.mxu0 %v311
  %802 = vmatpush.msra.mxu0 %v308
  %803 = vmatpush.msra.mxu0 %v305
  %804 = vmatpush.msra.mxu0 %v302
  %805 = vmatpush.msra.mxu0 %v299
  %806 = vmatpush.msra.mxu0 %v296
  %807 = vmatpush.msra.mxu0 %v293
  %808 = vmatpush.msra.mxu0 %v290
  %809 = vmatpush.msra.mxu0 %v287
  %810 = vmatpush.msra.mxu0 %v284
  %811 = vmatpush.msra.mxu0 %v281
  %812 = vmatpush.msra.mxu0 %v278
  %813 = vmatmul.f32.gmra.mxu0 %v770
  %v814 = vpop.f32.mrf.mxu0
  %v815 = vadd.f32 0.0, %v814
  %816 = vdwg.mxu0
  %817 = vmatpush.msra.mxu0 %v324
  %818 = vmatpush.msra.mxu0 %v321
  %819 = vmatpush.msra.mxu0 %v318
  %820 = vmatpush.msra.mxu0 %v315
  %821 = vmatpush.msra.mxu0 %v312
  %822 = vmatpush.msra.mxu0 %v309
  %823 = vmatpush.msra.mxu0 %v306
  %824 = vmatpush.msra.mxu0 %v303
  %825 = vmatpush.msra.mxu0 %v300
  %826 = vmatpush.msra.mxu0 %v297
  %827 = vmatpush.msra.mxu0 %v294
  %828 = vmatpush.msra.mxu0 %v291
  %829 = vmatpush.msra.mxu0 %v288
  %830 = vmatpush.msra.mxu0 %v285
  %831 = vmatpush.msra.mxu0 %v282
  %832 = vmatpush.msra.mxu0 %v279
  %833 = vmatmul.f32.gmra.mxu0 %v770
  %v834 = vpop.f32.mrf.mxu0
  %v835 = vadd.f32 0.0, %v834
  %836 = vdwg.mxu0
  %v837 = vadd.f32 %v774, %v795
  %v838 = vxor.u32 %v837, 2147483648
  %v839 = vmul.f32 %v838, 1.442695
  %v840 = vpow.pop %v839
  %v841 = vadd.f32 %v840, 1.0
  %v842 = vrcp.pop %v841
  %v843 = vmul.f32 %v841, %v842
  %v844 = vsub.f32 1.0, %v843
  %v845 = vmul.f32 %v842, %v844
  %v846 = vadd.f32 %v842, %v845
  %vm847 = vweird.f32 %v841
  %vm848 = vweird.f32 %v842
  %vm849 = vmor %vm847, %vm848
  %v850 = vsel %vm849, %v842, %v846
  %v851 = vand.u32 2147483647, %v841
  %vm852 = vcmp.eq.f32.partialorder %v851, 8.507059e+37
  %v853 = vand.u32 %v841, 2147483648
  %v854 = vor.u32 1.1754944e-38, %v853
  %v855 = vsel %vm852, %v854, %v850
  %v856 = vmul.f32 1.0, %v855
  %v857 = vadd.f32 %v775, %v815
  %v858 = vxor.u32 %v857, 2147483648
  %v859 = vmul.f32 %v858, 1.442695
  %v860 = vpow.pop %v859
  %v861 = vadd.f32 %v860, 1.0
  %v862 = vrcp.pop %v861
  %v863 = vmul.f32 %v861, %v862
  %v864 = vsub.f32 1.0, %v863
  %v865 = vmul.f32 %v862, %v864
  %v866 = vadd.f32 %v862, %v865
  %vm867 = vweird.f32 %v861
  %vm868 = vweird.f32 %v862
  %vm869 = vmor %vm867, %vm868
  %v870 = vsel %vm869, %v862, %v866
  %v871 = vand.u32 2147483647, %v861
  %vm872 = vcmp.eq.f32.partialorder %v871, 8.507059e+37
  %v873 = vand.u32 %v861, 2147483648
  %v874 = vor.u32 1.1754944e-38, %v873
  %v875 = vsel %vm872, %v874, %v870
  %v876 = vmul.f32 1.0, %v875
  %v877 = vadd.f32 %v835, %v226
  %v878 = vmul.f32 %v856, %v877
  %v879 = vadd.f32 %v776, %v878
  %v880 = vtanh.pop %v879
  %v881 = vsub.f32 %v770, %v880
  %v882 = vmul.f32 %v876, %v881
  %v883 = vadd.f32 %v880, %v882
  %s884 = smul.u32 6, 3
  %s885 = smul.addr %s884, 8
  %s886 = scalar_lea.vmem [#allocation2], %s885
  %v887 = vld [vmem:[%s886] sm:$0xff]
  %v888 = vld [vmem:[%s886 + $0x8] sm:$0xff]
  %v889 = vld [vmem:[%s886 + $0x10] sm:$0xff]
  %890 = vmatpush.msra.mxu0 %v322
  %891 = vmatpush.msra.mxu0 %v319
  %892 = vmatpush.msra.mxu0 %v316
  %893 = vmatpush.msra.mxu0 %v313
  %894 = vmatpush.msra.mxu0 %v310
  %895 = vmatpush.msra.mxu0 %v307
  %896 = vmatpush.msra.mxu0 %v304
  %897 = vmatpush.msra.mxu0 %v301
  %898 = vmatpush.msra.mxu0 %v298
  %899 = vmatpush.msra.mxu0 %v295
  %900 = vmatpush.msra.mxu0 %v292
  %901 = vmatpush.msra.mxu0 %v289
  %902 = vmatpush.msra.mxu0 %v286
  %903 = vmatpush.msra.mxu0 %v283
  %904 = vmatpush.msra.mxu0 %v280
  %905 = vmatpush.msra.mxu0 %v277
  %906 = vmatmul.f32.gmra.mxu0 %v883
  %v907 = vpop.f32.mrf.mxu0
  %v908 = vadd.f32 0.0, %v907
  %909 = vdwg.mxu0
  %910 = vmatpush.msra.mxu0 %v323
  %911 = vmatpush.msra.mxu0 %v320
  %912 = vmatpush.msra.mxu0 %v317
  %913 = vmatpush.msra.mxu0 %v314
  %914 = vmatpush.msra.mxu0 %v311
  %915 = vmatpush.msra.mxu0 %v308
  %916 = vmatpush.msra.mxu0 %v305
  %917 = vmatpush.msra.mxu0 %v302
  %918 = vmatpush.msra.mxu0 %v299
  %919 = vmatpush.msra.mxu0 %v296
  %920 = vmatpush.msra.mxu0 %v293
  %921 = vmatpush.msra.mxu0 %v290
  %922 = vmatpush.msra.mxu0 %v287
  %923 = vmatpush.msra.mxu0 %v284
  %924 = vmatpush.msra.mxu0 %v281
  %925 = vmatpush.msra.mxu0 %v278
  %926 = vmatmul.f32.gmra.mxu0 %v883
  %v927 = vpop.f32.mrf.mxu0
  %v928 = vadd.f32 0.0, %v927
  %929 = vdwg.mxu0
  %930 = vmatpush.msra.mxu0 %v324
  %931 = vmatpush.msra.mxu0 %v321
  %932 = vmatpush.msra.mxu0 %v318
  %933 = vmatpush.msra.mxu0 %v315
  %934 = vmatpush.msra.mxu0 %v312
  %935 = vmatpush.msra.mxu0 %v309
  %936 = vmatpush.msra.mxu0 %v306
  %937 = vmatpush.msra.mxu0 %v303
  %938 = vmatpush.msra.mxu0 %v300
  %939 = vmatpush.msra.mxu0 %v297
  %940 = vmatpush.msra.mxu0 %v294
  %941 = vmatpush.msra.mxu0 %v291
  %942 = vmatpush.msra.mxu0 %v288
  %943 = vmatpush.msra.mxu0 %v285
  %944 = vmatpush.msra.mxu0 %v282
  %945 = vmatpush.msra.mxu0 %v279
  %946 = vmatmul.f32.gmra.mxu0 %v883
  %v947 = vpop.f32.mrf.mxu0
  %v948 = vadd.f32 0.0, %v947
  %949 = vdwg.mxu0
  %v950 = vadd.f32 %v887, %v908
  %v951 = vxor.u32 %v950, 2147483648
  %v952 = vmul.f32 %v951, 1.442695
  %v953 = vpow.pop %v952
  %v954 = vadd.f32 %v953, 1.0
  %v955 = vrcp.pop %v954
  %v956 = vmul.f32 %v954, %v955
  %v957 = vsub.f32 1.0, %v956
  %v958 = vmul.f32 %v955, %v957
  %v959 = vadd.f32 %v955, %v958
  %vm960 = vweird.f32 %v954
  %vm961 = vweird.f32 %v955
  %vm962 = vmor %vm960, %vm961
  %v963 = vsel %vm962, %v955, %v959
  %v964 = vand.u32 2147483647, %v954
  %vm965 = vcmp.eq.f32.partialorder %v964, 8.507059e+37
  %v966 = vand.u32 %v954, 2147483648
  %v967 = vor.u32 1.1754944e-38, %v966
  %v968 = vsel %vm965, %v967, %v963
  %v969 = vmul.f32 1.0, %v968
  %v970 = vadd.f32 %v888, %v928
  %v971 = vxor.u32 %v970, 2147483648
  %v972 = vmul.f32 %v971, 1.442695
  %v973 = vpow.pop %v972
  %v974 = vadd.f32 %v973, 1.0
  %v975 = vrcp.pop %v974
  %v976 = vmul.f32 %v974, %v975
  %v977 = vsub.f32 1.0, %v976
  %v978 = vmul.f32 %v975, %v977
  %v979 = vadd.f32 %v975, %v978
  %vm980 = vweird.f32 %v974
  %vm981 = vweird.f32 %v975
  %vm982 = vmor %vm980, %vm981
  %v983 = vsel %vm982, %v975, %v979
  %v984 = vand.u32 2147483647, %v974
  %vm985 = vcmp.eq.f32.partialorder %v984, 8.507059e+37
  %v986 = vand.u32 %v974, 2147483648
  %v987 = vor.u32 1.1754944e-38, %v986
  %v988 = vsel %vm985, %v987, %v983
  %v989 = vmul.f32 1.0, %v988
  %v990 = vadd.f32 %v948, %v226
  %v991 = vmul.f32 %v969, %v990
  %v992 = vadd.f32 %v889, %v991
  %v993 = vtanh.pop %v992
  %v994 = vsub.f32 %v883, %v993
  %v995 = vmul.f32 %v989, %v994
  %v996 = vadd.f32 %v993, %v995
  %s997 = smul.u32 7, 3
  %s998 = smul.addr %s997, 8
  %s999 = scalar_lea.vmem [#allocation2], %s998
  %v1000 = vld [vmem:[%s999] sm:$0xff]
  %v1001 = vld [vmem:[%s999 + $0x8] sm:$0xff]
  %v1002 = vld [vmem:[%s999 + $0x10] sm:$0xff]
  %1003 = vmatpush.msra.mxu0 %v322
  %1004 = vmatpush.msra.mxu0 %v319
  %1005 = vmatpush.msra.mxu0 %v316
  %1006 = vmatpush.msra.mxu0 %v313
  %1007 = vmatpush.msra.mxu0 %v310
  %1008 = vmatpush.msra.mxu0 %v307
  %1009 = vmatpush.msra.mxu0 %v304
  %1010 = vmatpush.msra.mxu0 %v301
  %1011 = vmatpush.msra.mxu0 %v298
  %1012 = vmatpush.msra.mxu0 %v295
  %1013 = vmatpush.msra.mxu0 %v292
  %1014 = vmatpush.msra.mxu0 %v289
  %1015 = vmatpush.msra.mxu0 %v286
  %1016 = vmatpush.msra.mxu0 %v283
  %1017 = vmatpush.msra.mxu0 %v280
  %1018 = vmatpush.msra.mxu0 %v277
  %1019 = vmatmul.f32.gmra.mxu0 %v996
  %v1020 = vpop.f32.mrf.mxu0
  %v1021 = vadd.f32 0.0, %v1020
  %1022 = vdwg.mxu0
  %1023 = vmatpush.msra.mxu0 %v323
  %1024 = vmatpush.msra.mxu0 %v320
  %1025 = vmatpush.msra.mxu0 %v317
  %1026 = vmatpush.msra.mxu0 %v314
  %1027 = vmatpush.msra.mxu0 %v311
  %1028 = vmatpush.msra.mxu0 %v308
  %1029 = vmatpush.msra.mxu0 %v305
  %1030 = vmatpush.msra.mxu0 %v302
  %1031 = vmatpush.msra.mxu0 %v299
  %1032 = vmatpush.msra.mxu0 %v296
  %1033 = vmatpush.msra.mxu0 %v293
  %1034 = vmatpush.msra.mxu0 %v290
  %1035 = vmatpush.msra.mxu0 %v287
  %1036 = vmatpush.msra.mxu0 %v284
  %1037 = vmatpush.msra.mxu0 %v281
  %1038 = vmatpush.msra.mxu0 %v278
  %1039 = vmatmul.f32.gmra.mxu0 %v996
  %v1040 = vpop.f32.mrf.mxu0
  %v1041 = vadd.f32 0.0, %v1040
  %1042 = vdwg.mxu0
  %1043 = vmatpush.msra.mxu0 %v324
  %1044 = vmatpush.msra.mxu0 %v321
  %1045 = vmatpush.msra.mxu0 %v318
  %1046 = vmatpush.msra.mxu0 %v315
  %1047 = vmatpush.msra.mxu0 %v312
  %1048 = vmatpush.msra.mxu0 %v309
  %1049 = vmatpush.msra.mxu0 %v306
  %1050 = vmatpush.msra.mxu0 %v303
  %1051 = vmatpush.msra.mxu0 %v300
  %1052 = vmatpush.msra.mxu0 %v297
  %1053 = vmatpush.msra.mxu0 %v294
  %1054 = vmatpush.msra.mxu0 %v291
  %1055 = vmatpush.msra.mxu0 %v288
  %1056 = vmatpush.msra.mxu0 %v285
  %1057 = vmatpush.msra.mxu0 %v282
  %1058 = vmatpush.msra.mxu0 %v279
  %1059 = vmatmul.f32.gmra.mxu0 %v996
  %v1060 = vpop.f32.mrf.mxu0
  %v1061 = vadd.f32 0.0, %v1060
  %1062 = vdwg.mxu0
  %v1063 = vadd.f32 %v1000, %v1021
  %v1064 = vxor.u32 %v1063, 2147483648
  %v1065 = vmul.f32 %v1064, 1.442695
  %v1066 = vpow.pop %v1065
  %v1067 = vadd.f32 %v1066, 1.0
  %v1068 = vrcp.pop %v1067
  %v1069 = vmul.f32 %v1067, %v1068
  %v1070 = vsub.f32 1.0, %v1069
  %v1071 = vmul.f32 %v1068, %v1070
  %v1072 = vadd.f32 %v1068, %v1071
  %vm1073 = vweird.f32 %v1067
  %vm1074 = vweird.f32 %v1068
  %vm1075 = vmor %vm1073, %vm1074
  %v1076 = vsel %vm1075, %v1068, %v1072
  %v1077 = vand.u32 2147483647, %v1067
  %vm1078 = vcmp.eq.f32.partialorder %v1077, 8.507059e+37
  %v1079 = vand.u32 %v1067, 2147483648
  %v1080 = vor.u32 1.1754944e-38, %v1079
  %v1081 = vsel %vm1078, %v1080, %v1076
  %v1082 = vmul.f32 1.0, %v1081
  %v1083 = vadd.f32 %v1001, %v1041
  %v1084 = vxor.u32 %v1083, 2147483648
  %v1085 = vmul.f32 %v1084, 1.442695
  %v1086 = vpow.pop %v1085
  %v1087 = vadd.f32 %v1086, 1.0
  %v1088 = vrcp.pop %v1087
  %v1089 = vmul.f32 %v1087, %v1088
  %v1090 = vsub.f32 1.0, %v1089
  %v1091 = vmul.f32 %v1088, %v1090
  %v1092 = vadd.f32 %v1088, %v1091
  %vm1093 = vweird.f32 %v1087
  %vm1094 = vweird.f32 %v1088
  %vm1095 = vmor %vm1093, %vm1094
  %v1096 = vsel %vm1095, %v1088, %v1092
  %v1097 = vand.u32 2147483647, %v1087
  %vm1098 = vcmp.eq.f32.partialorder %v1097, 8.507059e+37
  %v1099 = vand.u32 %v1087, 2147483648
  %v1100 = vor.u32 1.1754944e-38, %v1099
  %v1101 = vsel %vm1098, %v1100, %v1096
  %v1102 = vmul.f32 1.0, %v1101
  %v1103 = vadd.f32 %v1061, %v226
  %v1104 = vmul.f32 %v1082, %v1103
  %v1105 = vadd.f32 %v1002, %v1104
  %v1106 = vtanh.pop %v1105
  %v1107 = vsub.f32 %v996, %v1106
  %v1108 = vmul.f32 %v1102, %v1107
  %v1109 = vadd.f32 %v1106, %v1108
  %s1110 = scalar_lea.vmem %s1, 768
  %v1111 = vld [vmem:[%s1110] sm:$0xff]
  %v1112 = vld [vmem:[%s1110 + $0x18] sm:$0xff]
  %v1113 = vld [vmem:[%s1110 + $0x30] sm:$0xff]
  %v1114 = vld [vmem:[%s1110 + $0x48] sm:$0xff]
  %v1115 = vld [vmem:[%s1110 + $0x60] sm:$0xff]
  %v1116 = vld [vmem:[%s1110 + $0x78] sm:$0xff]
  %v1117 = vld [vmem:[%s1110 + $0x90] sm:$0xff]
  %v1118 = vld [vmem:[%s1110 + $0xa8] sm:$0xff]
  %v1119 = vld [vmem:[%s1110 + $0xc0] sm:$0xff]
  %v1120 = vld [vmem:[%s1110 + $0xd8] sm:$0xff]
  %v1121 = vld [vmem:[%s1110 + $0xf0] sm:$0xff]
  %v1122 = vld [vmem:[%s1110 + $0x108] sm:$0xff]
  %v1123 = vld [vmem:[%s1110 + $0x120] sm:$0xff]
  %v1124 = vld [vmem:[%s1110 + $0x138] sm:$0xff]
  %v1125 = vld [vmem:[%s1110 + $0x150] sm:$0xff]
  %v1126 = vld [vmem:[%s1110 + $0x168] sm:$0xff]
  %v1127 = vld [vmem:[%s2 + $0x2] sm:$0x1]
  %v1128 = vperm.slane %v1127, 0
  %1129 = vmatpush.msra.mxu0 %v1126
  %1130 = vmatpush.msra.mxu0 %v1125
  %1131 = vmatpush.msra.mxu0 %v1124
  %1132 = vmatpush.msra.mxu0 %v1123
  %1133 = vmatpush.msra.mxu0 %v1122
  %1134 = vmatpush.msra.mxu0 %v1121
  %1135 = vmatpush.msra.mxu0 %v1120
  %1136 = vmatpush.msra.mxu0 %v1119
  %1137 = vmatpush.msra.mxu0 %v1118
  %1138 = vmatpush.msra.mxu0 %v1117
  %1139 = vmatpush.msra.mxu0 %v1116
  %1140 = vmatpush.msra.mxu0 %v1115
  %1141 = vmatpush.msra.mxu0 %v1114
  %1142 = vmatpush.msra.mxu0 %v1113
  %1143 = vmatpush.msra.mxu0 %v1112
  %1144 = vmatpush.msra.mxu0 %v1111
  %1145 = vmatmul.f32.gmra.mxu0 %v1109
  %v1146 = vpop.f32.mrf.mxu0
  %v1147 = vadd.f32 %v1128, %v1146
  %1148 = vdwg.mxu0
  %1149 = vst [vmem:[%s3] sm:$0xff] %v1147
  // Predicated region
  $region14: #{gru_model_forward.1} parent=0 // pred_check
    _
  $region15: #{gru_model_forward.1} parent=0 // pred_check_branch
    %1151 = sbr.rel (0) target = $region17
  $region16: #{gru_model_forward.1} parent=0 // pred_region
    _
  $region17: #{gru_model_forward.1} parent=0 // pred_fallthru
    _
  // Predicated region
  $region18: #{gru_model_forward.1} parent=0 // pred_check
    _
  $region19: #{gru_model_forward.1} parent=0 // pred_check_branch
    %1153 = sbr.rel (0) target = $region21
  $region20: #{gru_model_forward.1} parent=0 // pred_region
    _
  $region21: #{gru_model_forward.1} parent=0 // pred_fallthru
    _

</llo_original>
